<compile_context>
chip_gen: v7x
topology: tpu7x:2x2x1
jax: 0.10.0
libtpu: 0.0.40
codegen_flags: <defaults>
</compile_context>

<pallas_src>
import numpy as np
import jax
import jax.numpy as jnp
from jax import lax
from jax.experimental import pallas as pl
from jax.experimental.pallas import tpu as pltpu

SAMPLE_RATE = 16000
N_FFT = 512
HOP = 128
WIN = 512
N_BANDS = 15
FREQ_LOW = 150.0
FREQ_HIGH = 8000.0
FRAME_LEN = 30            # envelope smoothing length (frames)
HALF = FRAME_LEN // 2     # conv1d padding
EPS = 1e-8

N_FREQ_K = N_FFT // 2     # 256: Nyquist bin dropped (its filter row is all zero)
NB_PAD = 128              # filter bank padded to one full lane group


# ------------------------------------------------------------- constants ----

def _fused_dft_matrix_np():
    """(N_FFT, 2*N_FREQ_K): [window*cos | -window*sin] / sqrt(n_fft)."""
    n = np.arange(N_FFT, dtype=np.float64)[:, None]
    f = np.arange(N_FREQ_K, dtype=np.float64)[None, :]
    ang = 2.0 * np.pi * n * f / N_FFT
    win = 0.5 * (1.0 - np.cos(2.0 * np.pi * np.arange(WIN) / WIN))[:, None]  # periodic Hann
    scale = 1.0 / np.sqrt(N_FFT)                      # torch.stft(normalized=True)
    cw = win * np.cos(ang) * scale
    sw = -win * np.sin(ang) * scale
    return np.concatenate([cw, sw], axis=1).astype(np.float32)       # (512, 512)


def _filter_bank_padded_np():
    """(N_FREQ_K, NB_PAD) 1/3-octave filter bank, zero-padded to 128 lanes."""
    freq_bins = np.linspace(0.0, SAMPLE_RATE / 2.0, N_FFT // 2 + 1)
    center = np.logspace(np.log10(FREQ_LOW), np.log10(FREQ_HIGH), N_BANDS + 2)[:-1]
    edges = np.sqrt(center[:-1] * center[1:])          # (N_BANDS,)
    lows = np.concatenate([edges[:1], edges[:-1]])     # low_0 = edges[0] (reference quirk)
    highs = edges
    fb = ((freq_bins[:, None] >= lows[None, :]) &
          (freq_bins[:, None] <= highs[None, :])).astype(np.float32)  # (257, 15)
    fb = fb[:N_FREQ_K]                                  # Nyquist row is all zeros here
    return np.pad(fb, ((0, 0), (0, NB_PAD - N_BANDS)))  # (256, 128)


_CWSW_NP = _fused_dft_matrix_np()
_FB_NP = _filter_bank_padded_np()


# ---------------------------------------------------------------- kernel ----

def _make_stoi_kernel(bk, n_frames, fq):
    s = 2 * bk                                     # pred + target signals per block
    inv_frames = 1.0 / n_frames
    inv_nm1 = 1.0 / max(n_frames - 1, 1)           # unbiased variance (torch.var default)
    inv_corr = 1.0 / (n_frames + EPS)              # reference: sum / (T + eps)
    inv_avg = 1.0 / FRAME_LEN

    def kernel(frames_ref, cwsw_ref, fb_ref, out_ref):
        # frames_ref : (s*fq, 512) bf16  rows: [pred b0..bk-1 | tgt b0..bk-1] x fq frames;
        #              each signal's fq rows = 15 zero | n_frames real | zero tail.
        # cwsw_ref   : (512, 512)  bf16  fused windowed rDFT (cos | -sin), normalized.
        # fb_ref     : (256, 128)  f32   1/3-octave filter bank (lanes >= 15 are zero).
        # out_ref    : (8, 128)    f32   per-batch (rows) per-band (lanes) correlations.

        # rDFT power spectrum: one fused bf16 MXU matmul, f32 accumulation.
        reim = jnp.dot(frames_ref[...], cwsw_ref[...],
                       preferred_element_type=jnp.float32)             # (s*fq, 512)
        re = reim[:, :N_FREQ_K]
        im = reim[:, N_FREQ_K:]
        power = re * re + im * im                                       # (s*fq, 256)
        band = jnp.dot(power, fb_ref[...],
                       preferred_element_type=jnp.float32)              # (s*fq, 128)
        band3 = band.reshape(s, fq, NB_PAD)                             # fq % 8 == 0

        # 30-tap sliding mean == F.conv1d(ones(30)/30, padding=15, groups=nb)[..., :T].
        # Conv zero padding already lives in the zero frame rows, so the envelope is a
        # plain shifted-slice sum (unrolled, register space; no scratch, no concat).
        env = band3[:, 0:n_frames, :]
        for k in range(1, FRAME_LEN):
            env = env + band3[:, k:k + n_frames, :]
        env = env * inv_avg                                              # (s, T, 128)

        # Normalized band-wise correlation (STOI), stats over the T real frames.
        pe = env[:bk]                                                    # (bk, T, 128)
        te = env[bk:]
        pm = jnp.sum(pe, axis=1, keepdims=True) * inv_frames
        tm = jnp.sum(te, axis=1, keepdims=True) * inv_frames
        pc = pe - pm
        tc = te - tm
        pv = jnp.sum(pc * pc, axis=1) * inv_nm1                          # (bk, 128)
        tv = jnp.sum(tc * tc, axis=1) * inv_nm1
        ptc = jnp.sum(pc * tc, axis=1)
        corr = ptc * lax.rsqrt(pv + EPS) * lax.rsqrt(tv + EPS) * inv_corr

        if bk < 8:
            out_ref[...] = jnp.zeros((8, NB_PAD), jnp.float32)
        out_ref[0:bk, :] = corr

    return kernel


# --------------------------------------------------------------- wrapper ----

@jax.jit
def stoi_loss(pred, target):
    # pred, target: (B, 1, time) float32
    b = pred.shape[0]
    x = pred.reshape(b, -1).astype(jnp.float32)
    y = target.reshape(b, -1).astype(jnp.float32)
    time = x.shape[-1]

    # torch.stft(center=True, pad_mode='reflect', hann, normalized=True) framing.
    pad = N_FFT // 2
    xp = jnp.pad(x, ((0, 0), (pad, pad)), mode="reflect").astype(jnp.bfloat16)
    yp = jnp.pad(y, ((0, 0), (pad, pad)), mode="reflect").astype(jnp.bfloat16)
    n_frames = 1 + time // HOP
    idx = jnp.arange(n_frames)[:, None] * HOP + jnp.arange(N_FFT)[None, :]
    # TODO(synk): for long clips, build frames in-kernel from the padded signal
    # (HOP == lane width) and block the frame axis instead of materializing the
    # 4x-overlapped gather, to stay within v7x's 64 MiB VMEM.
    pf = xp[:, idx]                                     # (B, T, 512) bf16
    tf = yp[:, idx]

    # Bake the envelope conv's zero padding into the operand: HALF leading zero
    # frames + real frames + zero tail, rounded so fq covers the 30-tap overhang
    # and is a sublane multiple.
    fq = ((n_frames + FRAME_LEN - 1 + 7) // 8) * 8      # >= n_frames + 29, mult of 8
    bk = max(1, min(b, 8, max(1, 128 // fq)))           # fatten the MXU M dim
    g = -(-b // bk)
    bpad = g * bk
    pf = jnp.pad(pf, ((0, bpad - b), (HALF, fq - HALF - n_frames), (0, 0)))
    tf = jnp.pad(tf, ((0, bpad - b), (HALF, fq - HALF - n_frames), (0, 0)))

    # Pack pred + target of each batch block into one fat-M matmul operand:
    # rows ordered (block, signal, batch-in-block, frame).
    packed = jnp.stack([pf.reshape(g, bk, fq, N_FFT),
                        tf.reshape(g, bk, fq, N_FFT)], axis=1)
    packed = packed.reshape(g * 2 * bk * fq, N_FFT)     # (g*2*bk*fq, 512) bf16

    cwsw = jnp.asarray(_CWSW_NP, dtype=jnp.bfloat16)    # (512, 512)
    fbp = jnp.asarray(_FB_NP, dtype=jnp.float32)        # (256, 128)

    rows = 2 * bk * fq
    out = pl.pallas_call(
        _make_stoi_kernel(bk, n_frames, fq),
        out_shape=jax.ShapeDtypeStruct((g * 8, NB_PAD), jnp.float32),
        grid_spec=pltpu.PrefetchScalarGridSpec(
            num_scalar_prefetch=0,
            grid=(g,),
            in_specs=[
                pl.BlockSpec((rows, N_FFT), lambda i: (i, 0)),
                pl.BlockSpec((N_FFT, 2 * N_FREQ_K), lambda i: (0, 0)),
                pl.BlockSpec((N_FREQ_K, NB_PAD), lambda i: (0, 0)),
            ],
            out_specs=pl.BlockSpec((8, NB_PAD), lambda i: (i, 0)),
        ),
        compiler_params=pltpu.CompilerParams(
            dimension_semantics=("parallel",),
            vmem_limit_bytes=32 * 1024 * 1024,
        ),
    )(packed, cwsw, fbp)

    # Per-batch STOI = mean of the 15 band correlations; padded rows/lanes are 0.
    band_corr = out.reshape(g, 8, NB_PAD)[:, :bk, :N_BANDS].reshape(g * bk, N_BANDS)
    scores = jnp.sum(band_corr[:b], axis=-1) / N_BANDS
    return -jnp.mean(scores)


if __name__ == "__main__":
    key = jax.random.PRNGKey(0)
    k1, k2 = jax.random.split(key)
    B, T = 2, 1024
    pred = jax.random.normal(k1, (B, 1, T), dtype=jnp.float32)
    target = jax.random.normal(k2, (B, 1, T), dtype=jnp.float32)
    loss = stoi_loss(pred, target)
    jax.block_until_ready(loss)
    print("KERNEL_OK")
</pallas_src>

<mosaic_0001>
module attributes {stable_mosaic.version = 11 : i64} {
  func.func @kernel(%arg0: i32, %arg1: memref<160x512xbf16, #tpu.memory_space<vmem>>, %arg2: memref<512x512xbf16, #tpu.memory_space<vmem>>, %arg3: memref<256x128xf32, #tpu.memory_space<vmem>>, %arg4: memref<8x128xf32, #tpu.memory_space<vmem>>) attributes {dimension_semantics = [#tpu.dimension_semantics<parallel>], iteration_bounds = array<i64: 1>, scalar_prefetch = 0 : i64, scratch_operands = 0 : i64, tpu.core_type = #tpu.core_type<tc>, window_params = [{transform_indices = @transform_0, window_bounds = array<i64: 160, 512>}, {pipeline_mode = #tpu.pipeline_mode<synchronous>, transform_indices = @transform_1, window_bounds = array<i64: 512, 512>}, {pipeline_mode = #tpu.pipeline_mode<synchronous>, transform_indices = @transform_2, window_bounds = array<i64: 256, 128>}, {transform_indices = @transform_3, window_bounds = array<i64: 8, 128>}]} {
    %c0 = arith.constant 0 : index
    %c0_0 = arith.constant 0 : index
    %0 = vector.load %arg1[%c0, %c0_0] : memref<160x512xbf16, #tpu.memory_space<vmem>>, vector<160x512xbf16>
    %c0_1 = arith.constant 0 : index
    %c0_2 = arith.constant 0 : index
    %1 = vector.load %arg2[%c0_1, %c0_2] : memref<512x512xbf16, #tpu.memory_space<vmem>>, vector<512x512xbf16>
    %cst = arith.constant dense<0.000000e+00> : vector<160x512xf32>
    %2 = tpu.matmul %0, %1, %cst {dimension_numbers = #tpu.dot_dimension_numbers<[1], [0], [0], [1], [0, 0, 1, 1], [], []>} : vector<160x512xbf16>, vector<512x512xbf16>, vector<160x512xf32> -> vector<160x512xf32>
    %3 = vector.extract_strided_slice %2 {offsets = [0, 0], sizes = [160, 256], strides = [1, 1]} : vector<160x512xf32> to vector<160x256xf32>
    %4 = vector.extract_strided_slice %2 {offsets = [0, 256], sizes = [160, 256], strides = [1, 1]} : vector<160x512xf32> to vector<160x256xf32>
    %5 = arith.mulf %3, %3 : vector<160x256xf32>
    %6 = arith.mulf %4, %4 : vector<160x256xf32>
    %7 = arith.addf %5, %6 : vector<160x256xf32>
    %c0_3 = arith.constant 0 : index
    %c0_4 = arith.constant 0 : index
    %8 = vector.load %arg3[%c0_3, %c0_4] : memref<256x128xf32, #tpu.memory_space<vmem>>, vector<256x128xf32>
    %cst_5 = arith.constant dense<0.000000e+00> : vector<160x128xf32>
    %9 = tpu.matmul %7, %8, %cst_5 {dimension_numbers = #tpu.dot_dimension_numbers<[1], [0], [0], [1], [0, 0, 1, 1], [], []>} : vector<160x256xf32>, vector<256x128xf32>, vector<160x128xf32> -> vector<160x128xf32>
    %10 = vector.shape_cast %9 : vector<160x128xf32> to vector<4x40x128xf32>
    %11 = vector.extract_strided_slice %10 {offsets = [0, 0, 0], sizes = [4, 9, 128], strides = [1, 1, 1]} : vector<4x40x128xf32> to vector<4x9x128xf32>
    %12 = vector.extract_strided_slice %10 {offsets = [0, 1, 0], sizes = [4, 9, 128], strides = [1, 1, 1]} : vector<4x40x128xf32> to vector<4x9x128xf32>
    %13 = arith.addf %11, %12 : vector<4x9x128xf32>
    %14 = vector.extract_strided_slice %10 {offsets = [0, 2, 0], sizes = [4, 9, 128], strides = [1, 1, 1]} : vector<4x40x128xf32> to vector<4x9x128xf32>
    %15 = arith.addf %13, %14 : vector<4x9x128xf32>
    %16 = vector.extract_strided_slice %10 {offsets = [0, 3, 0], sizes = [4, 9, 128], strides = [1, 1, 1]} : vector<4x40x128xf32> to vector<4x9x128xf32>
    %17 = arith.addf %15, %16 : vector<4x9x128xf32>
    %18 = vector.extract_strided_slice %10 {offsets = [0, 4, 0], sizes = [4, 9, 128], strides = [1, 1, 1]} : vector<4x40x128xf32> to vector<4x9x128xf32>
    %19 = arith.addf %17, %18 : vector<4x9x128xf32>
    %20 = vector.extract_strided_slice %10 {offsets = [0, 5, 0], sizes = [4, 9, 128], strides = [1, 1, 1]} : vector<4x40x128xf32> to vector<4x9x128xf32>
    %21 = arith.addf %19, %20 : vector<4x9x128xf32>
    %22 = vector.extract_strided_slice %10 {offsets = [0, 6, 0], sizes = [4, 9, 128], strides = [1, 1, 1]} : vector<4x40x128xf32> to vector<4x9x128xf32>
    %23 = arith.addf %21, %22 : vector<4x9x128xf32>
    %24 = vector.extract_strided_slice %10 {offsets = [0, 7, 0], sizes = [4, 9, 128], strides = [1, 1, 1]} : vector<4x40x128xf32> to vector<4x9x128xf32>
    %25 = arith.addf %23, %24 : vector<4x9x128xf32>
    %26 = vector.extract_strided_slice %10 {offsets = [0, 8, 0], sizes = [4, 9, 128], strides = [1, 1, 1]} : vector<4x40x128xf32> to vector<4x9x128xf32>
    %27 = arith.addf %25, %26 : vector<4x9x128xf32>
    %28 = vector.extract_strided_slice %10 {offsets = [0, 9, 0], sizes = [4, 9, 128], strides = [1, 1, 1]} : vector<4x40x128xf32> to vector<4x9x128xf32>
    %29 = arith.addf %27, %28 : vector<4x9x128xf32>
    %30 = vector.extract_strided_slice %10 {offsets = [0, 10, 0], sizes = [4, 9, 128], strides = [1, 1, 1]} : vector<4x40x128xf32> to vector<4x9x128xf32>
    %31 = arith.addf %29, %30 : vector<4x9x128xf32>
    %32 = vector.extract_strided_slice %10 {offsets = [0, 11, 0], sizes = [4, 9, 128], strides = [1, 1, 1]} : vector<4x40x128xf32> to vector<4x9x128xf32>
    %33 = arith.addf %31, %32 : vector<4x9x128xf32>
    %34 = vector.extract_strided_slice %10 {offsets = [0, 12, 0], sizes = [4, 9, 128], strides = [1, 1, 1]} : vector<4x40x128xf32> to vector<4x9x128xf32>
    %35 = arith.addf %33, %34 : vector<4x9x128xf32>
    %36 = vector.extract_strided_slice %10 {offsets = [0, 13, 0], sizes = [4, 9, 128], strides = [1, 1, 1]} : vector<4x40x128xf32> to vector<4x9x128xf32>
    %37 = arith.addf %35, %36 : vector<4x9x128xf32>
    %38 = vector.extract_strided_slice %10 {offsets = [0, 14, 0], sizes = [4, 9, 128], strides = [1, 1, 1]} : vector<4x40x128xf32> to vector<4x9x128xf32>
    %39 = arith.addf %37, %38 : vector<4x9x128xf32>
    %40 = vector.extract_strided_slice %10 {offsets = [0, 15, 0], sizes = [4, 9, 128], strides = [1, 1, 1]} : vector<4x40x128xf32> to vector<4x9x128xf32>
    %41 = arith.addf %39, %40 : vector<4x9x128xf32>
    %42 = vector.extract_strided_slice %10 {offsets = [0, 16, 0], sizes = [4, 9, 128], strides = [1, 1, 1]} : vector<4x40x128xf32> to vector<4x9x128xf32>
    %43 = arith.addf %41, %42 : vector<4x9x128xf32>
    %44 = vector.extract_strided_slice %10 {offsets = [0, 17, 0], sizes = [4, 9, 128], strides = [1, 1, 1]} : vector<4x40x128xf32> to vector<4x9x128xf32>
    %45 = arith.addf %43, %44 : vector<4x9x128xf32>
    %46 = vector.extract_strided_slice %10 {offsets = [0, 18, 0], sizes = [4, 9, 128], strides = [1, 1, 1]} : vector<4x40x128xf32> to vector<4x9x128xf32>
    %47 = arith.addf %45, %46 : vector<4x9x128xf32>
    %48 = vector.extract_strided_slice %10 {offsets = [0, 19, 0], sizes = [4, 9, 128], strides = [1, 1, 1]} : vector<4x40x128xf32> to vector<4x9x128xf32>
    %49 = arith.addf %47, %48 : vector<4x9x128xf32>
    %50 = vector.extract_strided_slice %10 {offsets = [0, 20, 0], sizes = [4, 9, 128], strides = [1, 1, 1]} : vector<4x40x128xf32> to vector<4x9x128xf32>
    %51 = arith.addf %49, %50 : vector<4x9x128xf32>
    %52 = vector.extract_strided_slice %10 {offsets = [0, 21, 0], sizes = [4, 9, 128], strides = [1, 1, 1]} : vector<4x40x128xf32> to vector<4x9x128xf32>
    %53 = arith.addf %51, %52 : vector<4x9x128xf32>
    %54 = vector.extract_strided_slice %10 {offsets = [0, 22, 0], sizes = [4, 9, 128], strides = [1, 1, 1]} : vector<4x40x128xf32> to vector<4x9x128xf32>
    %55 = arith.addf %53, %54 : vector<4x9x128xf32>
    %56 = vector.extract_strided_slice %10 {offsets = [0, 23, 0], sizes = [4, 9, 128], strides = [1, 1, 1]} : vector<4x40x128xf32> to vector<4x9x128xf32>
    %57 = arith.addf %55, %56 : vector<4x9x128xf32>
    %58 = vector.extract_strided_slice %10 {offsets = [0, 24, 0], sizes = [4, 9, 128], strides = [1, 1, 1]} : vector<4x40x128xf32> to vector<4x9x128xf32>
    %59 = arith.addf %57, %58 : vector<4x9x128xf32>
    %60 = vector.extract_strided_slice %10 {offsets = [0, 25, 0], sizes = [4, 9, 128], strides = [1, 1, 1]} : vector<4x40x128xf32> to vector<4x9x128xf32>
    %61 = arith.addf %59, %60 : vector<4x9x128xf32>
    %62 = vector.extract_strided_slice %10 {offsets = [0, 26, 0], sizes = [4, 9, 128], strides = [1, 1, 1]} : vector<4x40x128xf32> to vector<4x9x128xf32>
    %63 = arith.addf %61, %62 : vector<4x9x128xf32>
    %64 = vector.extract_strided_slice %10 {offsets = [0, 27, 0], sizes = [4, 9, 128], strides = [1, 1, 1]} : vector<4x40x128xf32> to vector<4x9x128xf32>
    %65 = arith.addf %63, %64 : vector<4x9x128xf32>
    %66 = vector.extract_strided_slice %10 {offsets = [0, 28, 0], sizes = [4, 9, 128], strides = [1, 1, 1]} : vector<4x40x128xf32> to vector<4x9x128xf32>
    %67 = arith.addf %65, %66 : vector<4x9x128xf32>
    %68 = vector.extract_strided_slice %10 {offsets = [0, 29, 0], sizes = [4, 9, 128], strides = [1, 1, 1]} : vector<4x40x128xf32> to vector<4x9x128xf32>
    %69 = arith.addf %67, %68 : vector<4x9x128xf32>
    %cst_6 = arith.constant 0.0333333351 : f32
    %70 = vector.broadcast %cst_6 : f32 to vector<4x9x128xf32>
    %71 = arith.mulf %69, %70 : vector<4x9x128xf32>
    %72 = vector.extract_strided_slice %71 {offsets = [0, 0, 0], sizes = [2, 9, 128], strides = [1, 1, 1]} : vector<4x9x128xf32> to vector<2x9x128xf32>
    %73 = vector.extract_strided_slice %71 {offsets = [2, 0, 0], sizes = [2, 9, 128], strides = [1, 1, 1]} : vector<4x9x128xf32> to vector<2x9x128xf32>
    %cst_7 = arith.constant dense<0.000000e+00> : vector<2x128xf32>
    %74 = vector.multi_reduction <add>, %72, %cst_7 [1] : vector<2x9x128xf32> to vector<2x128xf32>
    %75 = vector.shape_cast %74 : vector<2x128xf32> to vector<2x1x128xf32>
    %cst_8 = arith.constant 0.111111112 : f32
    %76 = vector.broadcast %cst_8 : f32 to vector<2x1x128xf32>
    %77 = arith.mulf %75, %76 : vector<2x1x128xf32>
    %cst_9 = arith.constant dense<0.000000e+00> : vector<2x128xf32>
    %78 = vector.multi_reduction <add>, %73, %cst_9 [1] : vector<2x9x128xf32> to vector<2x128xf32>
    %79 = vector.shape_cast %78 : vector<2x128xf32> to vector<2x1x128xf32>
    %cst_10 = arith.constant 0.111111112 : f32
    %80 = vector.broadcast %cst_10 : f32 to vector<2x1x128xf32>
    %81 = arith.mulf %79, %80 : vector<2x1x128xf32>
    %82 = vector.broadcast %77 : vector<2x1x128xf32> to vector<2x9x128xf32>
    %83 = arith.subf %72, %82 : vector<2x9x128xf32>
    %84 = vector.broadcast %81 : vector<2x1x128xf32> to vector<2x9x128xf32>
    %85 = arith.subf %73, %84 : vector<2x9x128xf32>
    %86 = arith.mulf %83, %83 : vector<2x9x128xf32>
    %cst_11 = arith.constant dense<0.000000e+00> : vector<2x128xf32>
    %87 = vector.multi_reduction <add>, %86, %cst_11 [1] : vector<2x9x128xf32> to vector<2x128xf32>
    %cst_12 = arith.constant 1.250000e-01 : f32
    %88 = vector.broadcast %cst_12 : f32 to vector<2x128xf32>
    %89 = arith.mulf %87, %88 : vector<2x128xf32>
    %90 = arith.mulf %85, %85 : vector<2x9x128xf32>
    %cst_13 = arith.constant dense<0.000000e+00> : vector<2x128xf32>
    %91 = vector.multi_reduction <add>, %90, %cst_13 [1] : vector<2x9x128xf32> to vector<2x128xf32>
    %cst_14 = arith.constant 1.250000e-01 : f32
    %92 = vector.broadcast %cst_14 : f32 to vector<2x128xf32>
    %93 = arith.mulf %91, %92 : vector<2x128xf32>
    %94 = arith.mulf %83, %85 : vector<2x9x128xf32>
    %cst_15 = arith.constant dense<0.000000e+00> : vector<2x128xf32>
    %95 = vector.multi_reduction <add>, %94, %cst_15 [1] : vector<2x9x128xf32> to vector<2x128xf32>
    %cst_16 = arith.constant 9.99999993E-9 : f32
    %96 = vector.broadcast %cst_16 : f32 to vector<2x128xf32>
    %97 = arith.addf %89, %96 : vector<2x128xf32>
    %98 = math.rsqrt %97 : vector<2x128xf32>
    %99 = arith.mulf %95, %98 : vector<2x128xf32>
    %cst_17 = arith.constant 9.99999993E-9 : f32
    %100 = vector.broadcast %cst_17 : f32 to vector<2x128xf32>
    %101 = arith.addf %93, %100 : vector<2x128xf32>
    %102 = math.rsqrt %101 : vector<2x128xf32>
    %103 = arith.mulf %99, %102 : vector<2x128xf32>
    %cst_18 = arith.constant 0.111111112 : f32
    %104 = vector.broadcast %cst_18 : f32 to vector<2x128xf32>
    %105 = arith.mulf %103, %104 : vector<2x128xf32>
    %cst_19 = arith.constant 0.000000e+00 : f32
    %106 = vector.broadcast %cst_19 : f32 to vector<8x128xf32>
    %c0_20 = arith.constant 0 : index
    %c0_21 = arith.constant 0 : index
    %107 = vector.load %arg4[%c0_20, %c0_21] : memref<8x128xf32, #tpu.memory_space<vmem>>, vector<8x128xf32>
    tpu.vector_store %arg4[%c0_20, %c0_21], %106 {strides = array<i32>} : memref<8x128xf32, #tpu.memory_space<vmem>>, vector<8x128xf32>,
    %c0_22 = arith.constant 0 : index
    %c0_23 = arith.constant 0 : index
    %108 = vector.load %arg4[%c0_22, %c0_23] : memref<8x128xf32, #tpu.memory_space<vmem>>, vector<2x128xf32>
    tpu.vector_store %arg4[%c0_22, %c0_23], %105 {strides = array<i32>} : memref<8x128xf32, #tpu.memory_space<vmem>>, vector<2x128xf32>,
    return
  }
  func.func @transform_0(%arg0: i32) -> (i32, i32) {
    %c0_i32 = arith.constant 0 : i32
    %c0_i32_0 = arith.constant 0 : i32
    return %arg0, %c0_i32 : i32, i32
  }
  func.func @transform_1(%arg0: i32) -> (i32, i32) {
    %c0_i32 = arith.constant 0 : i32
    %c0_i32_0 = arith.constant 0 : i32
    %c0_i32_1 = arith.constant 0 : i32
    return %c0_i32, %c0_i32_0 : i32, i32
  }
  func.func @transform_2(%arg0: i32) -> (i32, i32) {
    %c0_i32 = arith.constant 0 : i32
    %c0_i32_0 = arith.constant 0 : i32
    %c0_i32_1 = arith.constant 0 : i32
    return %c0_i32, %c0_i32_0 : i32, i32
  }
  func.func @transform_3(%arg0: i32) -> (i32, i32) {
    %c0_i32 = arith.constant 0 : i32
    %c0_i32_0 = arith.constant 0 : i32
    return %arg0, %c0_i32 : i32, i32
  }
}

</mosaic_0001>

<llo_original>
// kernel: stoi_loss.1
$region0: #{stoi_loss.1}
  #allocation0 [shape = 'u32[]', space=smem, size = 0x4, offset = 0x4, fixed_abs, tag = 'smem constant byte address 0x4 - core index']
  #allocation1 [shape = 'u32[144,128]{1,0:T(1,128)}', space=vmem, size = 0x12000, scoped, tag = 'internal scratch']
  %s0 = inlined_call_operand.vmem [shape: bf16[160,512], index: 0, kind: input, shape index: {}]
  %s1 = inlined_call_operand.vmem [shape: bf16[512,512], index: 1, kind: input, shape index: {}]
  %s2 = inlined_call_operand.vmem [shape: f32[256,128], index: 2, kind: input, shape index: {}]
  %s3 = inlined_call_operand.vmem [shape: f32[8,128], index: 3, kind: output, shape index: {}]
  %s4 = sld [smem:[#allocation0]]
  $region22: #{stoi_loss.1} parent=0
    _
  %s6 = ssub.s32 1, %s4
  %s7 = scalar_select 0, %s6, %s4
  // Predicated region
  $region2: #{stoi_loss.1} parent=0 // pred_check
    _
  $region3: #{stoi_loss.1} parent=0 // pred_check_branch
    %9 = sbr.rel (0) target = $region5
  $region4: #{stoi_loss.1} parent=0 // pred_region
    _
  $region5: #{stoi_loss.1} parent=0 // pred_fallthru
    _
  // Predicated region
  $region6: #{stoi_loss.1} parent=0 // pred_check
    _
  $region7: #{stoi_loss.1} parent=0 // pred_check_branch
    %11 = sbr.rel (0) target = $region9
  $region8: #{stoi_loss.1} parent=0 // pred_region
    _
  $region9: #{stoi_loss.1} parent=0 // pred_fallthru
    _
  // Predicated region
  $region10: #{stoi_loss.1} parent=0 // pred_check
    _
  $region11: #{stoi_loss.1} parent=0 // pred_check_branch
    %13 = sbr.rel (0) target = $region13
  $region12: #{stoi_loss.1} parent=0 // pred_region
    _
  $region13: #{stoi_loss.1} parent=0 // pred_fallthru
    _
  %v14 = vld [vmem:[%s0] sm:$0xff]
  %v15 = vld [vmem:[%s0 + $0x8] sm:$0xff]
  %v16 = vld [vmem:[%s0 + $0x10] sm:$0xff]
  %v17 = vld [vmem:[%s0 + $0x18] sm:$0xff]
  %v18 = vld [vmem:[%s0 + $0x20] sm:$0xff]
  %v19 = vld [vmem:[%s0 + $0x28] sm:$0xff]
  %v20 = vld [vmem:[%s0 + $0x30] sm:$0xff]
  %v21 = vld [vmem:[%s0 + $0x38] sm:$0xff]
  %v22 = vld [vmem:[%s0 + $0x40] sm:$0xff]
  %v23 = vld [vmem:[%s0 + $0x48] sm:$0xff]
  %v24 = vld [vmem:[%s0 + $0x50] sm:$0xff]
  %v25 = vld [vmem:[%s0 + $0x58] sm:$0xff]
  %v26 = vld [vmem:[%s0 + $0x60] sm:$0xff]
  %v27 = vld [vmem:[%s0 + $0x68] sm:$0xff]
  %v28 = vld [vmem:[%s0 + $0x70] sm:$0xff]
  %v29 = vld [vmem:[%s0 + $0x78] sm:$0xff]
  %v30 = vld [vmem:[%s0 + $0x80] sm:$0xff]
  %v31 = vld [vmem:[%s0 + $0x88] sm:$0xff]
  %v32 = vld [vmem:[%s0 + $0x90] sm:$0xff]
  %v33 = vld [vmem:[%s0 + $0x98] sm:$0xff]
  %v34 = vld [vmem:[%s0 + $0xa0] sm:$0xff]
  %v35 = vld [vmem:[%s0 + $0xa8] sm:$0xff]
  %v36 = vld [vmem:[%s0 + $0xb0] sm:$0xff]
  %v37 = vld [vmem:[%s0 + $0xb8] sm:$0xff]
  %v38 = vld [vmem:[%s0 + $0xc0] sm:$0xff]
  %v39 = vld [vmem:[%s0 + $0xc8] sm:$0xff]
  %v40 = vld [vmem:[%s0 + $0xd0] sm:$0xff]
  %v41 = vld [vmem:[%s0 + $0xd8] sm:$0xff]
  %v42 = vld [vmem:[%s0 + $0xe0] sm:$0xff]
  %v43 = vld [vmem:[%s0 + $0xe8] sm:$0xff]
  %v44 = vld [vmem:[%s0 + $0xf0] sm:$0xff]
  %v45 = vld [vmem:[%s0 + $0xf8] sm:$0xff]
  %v46 = vld [vmem:[%s0 + $0x100] sm:$0xff]
  %v47 = vld [vmem:[%s0 + $0x108] sm:$0xff]
  %v48 = vld [vmem:[%s0 + $0x110] sm:$0xff]
  %v49 = vld [vmem:[%s0 + $0x118] sm:$0xff]
  %v50 = vld [vmem:[%s0 + $0x120] sm:$0xff]
  %v51 = vld [vmem:[%s0 + $0x128] sm:$0xff]
  %v52 = vld [vmem:[%s0 + $0x130] sm:$0xff]
  %v53 = vld [vmem:[%s0 + $0x138] sm:$0xff]
  %v54 = vld [vmem:[%s1] sm:$0xff]
  %v55 = vld [vmem:[%s1 + $0x8] sm:$0xff]
  %v56 = vld [vmem:[%s1 + $0x10] sm:$0xff]
  %v57 = vld [vmem:[%s1 + $0x18] sm:$0xff]
  %v58 = vld [vmem:[%s1 + $0x20] sm:$0xff]
  %v59 = vld [vmem:[%s1 + $0x28] sm:$0xff]
  %v60 = vld [vmem:[%s1 + $0x30] sm:$0xff]
  %v61 = vld [vmem:[%s1 + $0x38] sm:$0xff]
  %v62 = vld [vmem:[%s1 + $0x40] sm:$0xff]
  %v63 = vld [vmem:[%s1 + $0x48] sm:$0xff]
  %v64 = vld [vmem:[%s1 + $0x50] sm:$0xff]
  %v65 = vld [vmem:[%s1 + $0x58] sm:$0xff]
  %v66 = vld [vmem:[%s1 + $0x60] sm:$0xff]
  %v67 = vld [vmem:[%s1 + $0x68] sm:$0xff]
  %v68 = vld [vmem:[%s1 + $0x70] sm:$0xff]
  %v69 = vld [vmem:[%s1 + $0x78] sm:$0xff]
  %v70 = vld [vmem:[%s1 + $0x80] sm:$0xff]
  %v71 = vld [vmem:[%s1 + $0x88] sm:$0xff]
  %v72 = vld [vmem:[%s1 + $0x90] sm:$0xff]
  %v73 = vld [vmem:[%s1 + $0x98] sm:$0xff]
  %v74 = vld [vmem:[%s1 + $0xa0] sm:$0xff]
  %v75 = vld [vmem:[%s1 + $0xa8] sm:$0xff]
  %v76 = vld [vmem:[%s1 + $0xb0] sm:$0xff]
  %v77 = vld [vmem:[%s1 + $0xb8] sm:$0xff]
  %v78 = vld [vmem:[%s1 + $0xc0] sm:$0xff]
  %v79 = vld [vmem:[%s1 + $0xc8] sm:$0xff]
  %v80 = vld [vmem:[%s1 + $0xd0] sm:$0xff]
  %v81 = vld [vmem:[%s1 + $0xd8] sm:$0xff]
  %v82 = vld [vmem:[%s1 + $0xe0] sm:$0xff]
  %v83 = vld [vmem:[%s1 + $0xe8] sm:$0xff]
  %v84 = vld [vmem:[%s1 + $0xf0] sm:$0xff]
  %v85 = vld [vmem:[%s1 + $0xf8] sm:$0xff]
  %v86 = vld [vmem:[%s1 + $0x100] sm:$0xff]
  %v87 = vld [vmem:[%s1 + $0x108] sm:$0xff]
  %v88 = vld [vmem:[%s1 + $0x110] sm:$0xff]
  %v89 = vld [vmem:[%s1 + $0x118] sm:$0xff]
  %v90 = vld [vmem:[%s1 + $0x120] sm:$0xff]
  %v91 = vld [vmem:[%s1 + $0x128] sm:$0xff]
  %v92 = vld [vmem:[%s1 + $0x130] sm:$0xff]
  %v93 = vld [vmem:[%s1 + $0x138] sm:$0xff]
  %v94 = vld [vmem:[%s1 + $0x140] sm:$0xff]
  %v95 = vld [vmem:[%s1 + $0x148] sm:$0xff]
  %v96 = vld [vmem:[%s1 + $0x150] sm:$0xff]
  %v97 = vld [vmem:[%s1 + $0x158] sm:$0xff]
  %v98 = vld [vmem:[%s1 + $0x160] sm:$0xff]
  %v99 = vld [vmem:[%s1 + $0x168] sm:$0xff]
  %v100 = vld [vmem:[%s1 + $0x170] sm:$0xff]
  %v101 = vld [vmem:[%s1 + $0x178] sm:$0xff]
  %v102 = vld [vmem:[%s1 + $0x180] sm:$0xff]
  %v103 = vld [vmem:[%s1 + $0x188] sm:$0xff]
  %v104 = vld [vmem:[%s1 + $0x190] sm:$0xff]
  %v105 = vld [vmem:[%s1 + $0x198] sm:$0xff]
  %v106 = vld [vmem:[%s1 + $0x1a0] sm:$0xff]
  %v107 = vld [vmem:[%s1 + $0x1a8] sm:$0xff]
  %v108 = vld [vmem:[%s1 + $0x1b0] sm:$0xff]
  %v109 = vld [vmem:[%s1 + $0x1b8] sm:$0xff]
  %v110 = vld [vmem:[%s1 + $0x1c0] sm:$0xff]
  %v111 = vld [vmem:[%s1 + $0x1c8] sm:$0xff]
  %v112 = vld [vmem:[%s1 + $0x1d0] sm:$0xff]
  %v113 = vld [vmem:[%s1 + $0x1d8] sm:$0xff]
  %v114 = vld [vmem:[%s1 + $0x1e0] sm:$0xff]
  %v115 = vld [vmem:[%s1 + $0x1e8] sm:$0xff]
  %v116 = vld [vmem:[%s1 + $0x1f0] sm:$0xff]
  %v117 = vld [vmem:[%s1 + $0x1f8] sm:$0xff]
  %v118 = vld [vmem:[%s1 + $0x200] sm:$0xff]
  %v119 = vld [vmem:[%s1 + $0x208] sm:$0xff]
  %v120 = vld [vmem:[%s1 + $0x210] sm:$0xff]
  %v121 = vld [vmem:[%s1 + $0x218] sm:$0xff]
  %v122 = vld [vmem:[%s1 + $0x220] sm:$0xff]
  %v123 = vld [vmem:[%s1 + $0x228] sm:$0xff]
  %v124 = vld [vmem:[%s1 + $0x230] sm:$0xff]
  %v125 = vld [vmem:[%s1 + $0x238] sm:$0xff]
  %v126 = vld [vmem:[%s1 + $0x240] sm:$0xff]
  %v127 = vld [vmem:[%s1 + $0x248] sm:$0xff]
  %v128 = vld [vmem:[%s1 + $0x250] sm:$0xff]
  %v129 = vld [vmem:[%s1 + $0x258] sm:$0xff]
  %v130 = vld [vmem:[%s1 + $0x260] sm:$0xff]
  %v131 = vld [vmem:[%s1 + $0x268] sm:$0xff]
  %v132 = vld [vmem:[%s1 + $0x270] sm:$0xff]
  %v133 = vld [vmem:[%s1 + $0x278] sm:$0xff]
  %v134 = vld [vmem:[%s1 + $0x280] sm:$0xff]
  %v135 = vld [vmem:[%s1 + $0x288] sm:$0xff]
  %v136 = vld [vmem:[%s1 + $0x290] sm:$0xff]
  %v137 = vld [vmem:[%s1 + $0x298] sm:$0xff]
  %v138 = vld [vmem:[%s1 + $0x2a0] sm:$0xff]
  %v139 = vld [vmem:[%s1 + $0x2a8] sm:$0xff]
  %v140 = vld [vmem:[%s1 + $0x2b0] sm:$0xff]
  %v141 = vld [vmem:[%s1 + $0x2b8] sm:$0xff]
  %v142 = vld [vmem:[%s1 + $0x2c0] sm:$0xff]
  %v143 = vld [vmem:[%s1 + $0x2c8] sm:$0xff]
  %v144 = vld [vmem:[%s1 + $0x2d0] sm:$0xff]
  %v145 = vld [vmem:[%s1 + $0x2d8] sm:$0xff]
  %v146 = vld [vmem:[%s1 + $0x2e0] sm:$0xff]
  %v147 = vld [vmem:[%s1 + $0x2e8] sm:$0xff]
  %v148 = vld [vmem:[%s1 + $0x2f0] sm:$0xff]
  %v149 = vld [vmem:[%s1 + $0x2f8] sm:$0xff]
  %v150 = vld [vmem:[%s1 + $0x300] sm:$0xff]
  %v151 = vld [vmem:[%s1 + $0x308] sm:$0xff]
  %v152 = vld [vmem:[%s1 + $0x310] sm:$0xff]
  %v153 = vld [vmem:[%s1 + $0x318] sm:$0xff]
  %v154 = vld [vmem:[%s1 + $0x320] sm:$0xff]
  %v155 = vld [vmem:[%s1 + $0x328] sm:$0xff]
  %v156 = vld [vmem:[%s1 + $0x330] sm:$0xff]
  %v157 = vld [vmem:[%s1 + $0x338] sm:$0xff]
  %v158 = vld [vmem:[%s1 + $0x340] sm:$0xff]
  %v159 = vld [vmem:[%s1 + $0x348] sm:$0xff]
  %v160 = vld [vmem:[%s1 + $0x350] sm:$0xff]
  %v161 = vld [vmem:[%s1 + $0x358] sm:$0xff]
  %v162 = vld [vmem:[%s1 + $0x360] sm:$0xff]
  %v163 = vld [vmem:[%s1 + $0x368] sm:$0xff]
  %v164 = vld [vmem:[%s1 + $0x370] sm:$0xff]
  %v165 = vld [vmem:[%s1 + $0x378] sm:$0xff]
  %v166 = vld [vmem:[%s1 + $0x380] sm:$0xff]
  %v167 = vld [vmem:[%s1 + $0x388] sm:$0xff]
  %v168 = vld [vmem:[%s1 + $0x390] sm:$0xff]
  %v169 = vld [vmem:[%s1 + $0x398] sm:$0xff]
  %v170 = vld [vmem:[%s1 + $0x3a0] sm:$0xff]
  %v171 = vld [vmem:[%s1 + $0x3a8] sm:$0xff]
  %v172 = vld [vmem:[%s1 + $0x3b0] sm:$0xff]
  %v173 = vld [vmem:[%s1 + $0x3b8] sm:$0xff]
  %v174 = vld [vmem:[%s1 + $0x3c0] sm:$0xff]
  %v175 = vld [vmem:[%s1 + $0x3c8] sm:$0xff]
  %v176 = vld [vmem:[%s1 + $0x3d0] sm:$0xff]
  %v177 = vld [vmem:[%s1 + $0x3d8] sm:$0xff]
  %v178 = vld [vmem:[%s1 + $0x3e0] sm:$0xff]
  %v179 = vld [vmem:[%s1 + $0x3e8] sm:$0xff]
  %v180 = vld [vmem:[%s1 + $0x3f0] sm:$0xff]
  %v181 = vld [vmem:[%s1 + $0x3f8] sm:$0xff]
  %v222 = vunpack.c.l.b16 %v14
  %v223 = vunpack.c.h.b16 %v14
  %v224 = vunpack.c.l.b16 %v15
  %v225 = vunpack.c.h.b16 %v15
  %v226 = vunpack.c.l.b16 %v16
  %v227 = vunpack.c.h.b16 %v16
  %v228 = vunpack.c.l.b16 %v17
  %v229 = vunpack.c.h.b16 %v17
  %v230 = vunpack.c.l.b16 %v18
  %v231 = vunpack.c.h.b16 %v18
  %v232 = vunpack.c.l.b16 %v19
  %v233 = vunpack.c.h.b16 %v19
  %v234 = vunpack.c.l.b16 %v20
  %v235 = vunpack.c.h.b16 %v20
  %v236 = vunpack.c.l.b16 %v21
  %v237 = vunpack.c.h.b16 %v21
  %v238 = vunpack.c.l.b16 %v22
  %v239 = vunpack.c.h.b16 %v22
  %v240 = vunpack.c.l.b16 %v23
  %v241 = vunpack.c.h.b16 %v23
  %v242 = vunpack.c.l.b16 %v24
  %v243 = vunpack.c.h.b16 %v24
  %v244 = vunpack.c.l.b16 %v25
  %v245 = vunpack.c.h.b16 %v25
  %v246 = vunpack.c.l.b16 %v26
  %v247 = vunpack.c.h.b16 %v26
  %v248 = vunpack.c.l.b16 %v27
  %v249 = vunpack.c.h.b16 %v27
  %v250 = vunpack.c.l.b16 %v28
  %v251 = vunpack.c.h.b16 %v28
  %v252 = vunpack.c.l.b16 %v29
  %v253 = vunpack.c.h.b16 %v29
  %v254 = vunpack.c.l.b16 %v30
  %v255 = vunpack.c.h.b16 %v30
  %v256 = vunpack.c.l.b16 %v31
  %v257 = vunpack.c.h.b16 %v31
  %v258 = vunpack.c.l.b16 %v32
  %v259 = vunpack.c.h.b16 %v32
  %v260 = vunpack.c.l.b16 %v33
  %v261 = vunpack.c.h.b16 %v33
  %v262 = vunpack.c.l.b16 %v34
  %v263 = vunpack.c.h.b16 %v34
  %v264 = vunpack.c.l.b16 %v35
  %v265 = vunpack.c.h.b16 %v35
  %v266 = vunpack.c.l.b16 %v36
  %v267 = vunpack.c.h.b16 %v36
  %v268 = vunpack.c.l.b16 %v37
  %v269 = vunpack.c.h.b16 %v37
  %v270 = vunpack.c.l.b16 %v38
  %v271 = vunpack.c.h.b16 %v38
  %v272 = vunpack.c.l.b16 %v39
  %v273 = vunpack.c.h.b16 %v39
  %v274 = vunpack.c.l.b16 %v40
  %v275 = vunpack.c.h.b16 %v40
  %v276 = vunpack.c.l.b16 %v41
  %v277 = vunpack.c.h.b16 %v41
  %v278 = vunpack.c.l.b16 %v42
  %v279 = vunpack.c.h.b16 %v42
  %v280 = vunpack.c.l.b16 %v43
  %v281 = vunpack.c.h.b16 %v43
  %v282 = vunpack.c.l.b16 %v44
  %v283 = vunpack.c.h.b16 %v44
  %v284 = vunpack.c.l.b16 %v45
  %v285 = vunpack.c.h.b16 %v45
  %v286 = vunpack.c.l.b16 %v46
  %v287 = vunpack.c.h.b16 %v46
  %v288 = vunpack.c.l.b16 %v47
  %v289 = vunpack.c.h.b16 %v47
  %v290 = vunpack.c.l.b16 %v48
  %v291 = vunpack.c.h.b16 %v48
  %v292 = vunpack.c.l.b16 %v49
  %v293 = vunpack.c.h.b16 %v49
  %v294 = vunpack.c.l.b16 %v50
  %v295 = vunpack.c.h.b16 %v50
  %v296 = vunpack.c.l.b16 %v51
  %v297 = vunpack.c.h.b16 %v51
  %v298 = vunpack.c.l.b16 %v52
  %v299 = vunpack.c.h.b16 %v52
  %v300 = vunpack.c.l.b16 %v53
  %v301 = vunpack.c.h.b16 %v53
  %v302 = vpack.c.b16 %v226, %v222
  %v303 = vpack.c.b16 %v227, %v223
  %v304 = vpack.c.b16 %v228, %v224
  %v305 = vpack.c.b16 %v229, %v225
  %v306 = vpack.c.b16 %v234, %v230
  %v307 = vpack.c.b16 %v235, %v231
  %v308 = vpack.c.b16 %v236, %v232
  %v309 = vpack.c.b16 %v237, %v233
  %v310 = vpack.c.b16 %v242, %v238
  %v311 = vpack.c.b16 %v243, %v239
  %v312 = vpack.c.b16 %v244, %v240
  %v313 = vpack.c.b16 %v245, %v241
  %v314 = vpack.c.b16 %v250, %v246
  %v315 = vpack.c.b16 %v251, %v247
  %v316 = vpack.c.b16 %v252, %v248
  %v317 = vpack.c.b16 %v253, %v249
  %v318 = vpack.c.b16 %v258, %v254
  %v319 = vpack.c.b16 %v259, %v255
  %v320 = vpack.c.b16 %v260, %v256
  %v321 = vpack.c.b16 %v261, %v257
  %v322 = vpack.c.b16 %v266, %v262
  %v323 = vpack.c.b16 %v267, %v263
  %v324 = vpack.c.b16 %v268, %v264
  %v325 = vpack.c.b16 %v269, %v265
  %v326 = vpack.c.b16 %v274, %v270
  %v327 = vpack.c.b16 %v275, %v271
  %v328 = vpack.c.b16 %v276, %v272
  %v329 = vpack.c.b16 %v277, %v273
  %v330 = vpack.c.b16 %v282, %v278
  %v331 = vpack.c.b16 %v283, %v279
  %v332 = vpack.c.b16 %v284, %v280
  %v333 = vpack.c.b16 %v285, %v281
  %v334 = vpack.c.b16 %v290, %v286
  %v335 = vpack.c.b16 %v291, %v287
  %v336 = vpack.c.b16 %v292, %v288
  %v337 = vpack.c.b16 %v293, %v289
  %v338 = vpack.c.b16 %v298, %v294
  %v339 = vpack.c.b16 %v299, %v295
  %v340 = vpack.c.b16 %v300, %v296
  %v341 = vpack.c.b16 %v301, %v297
  %v510 = vunpack.c.l.b16 %v54
  %v511 = vunpack.c.h.b16 %v54
  %v512 = vunpack.c.l.b16 %v55
  %v513 = vunpack.c.h.b16 %v55
  %v514 = vunpack.c.l.b16 %v56
  %v515 = vunpack.c.h.b16 %v56
  %v516 = vunpack.c.l.b16 %v57
  %v517 = vunpack.c.h.b16 %v57
  %v518 = vunpack.c.l.b16 %v58
  %v519 = vunpack.c.h.b16 %v58
  %v520 = vunpack.c.l.b16 %v59
  %v521 = vunpack.c.h.b16 %v59
  %v522 = vunpack.c.l.b16 %v60
  %v523 = vunpack.c.h.b16 %v60
  %v524 = vunpack.c.l.b16 %v61
  %v525 = vunpack.c.h.b16 %v61
  %v526 = vunpack.c.l.b16 %v62
  %v527 = vunpack.c.h.b16 %v62
  %v528 = vunpack.c.l.b16 %v63
  %v529 = vunpack.c.h.b16 %v63
  %v530 = vunpack.c.l.b16 %v64
  %v531 = vunpack.c.h.b16 %v64
  %v532 = vunpack.c.l.b16 %v65
  %v533 = vunpack.c.h.b16 %v65
  %v534 = vunpack.c.l.b16 %v66
  %v535 = vunpack.c.h.b16 %v66
  %v536 = vunpack.c.l.b16 %v67
  %v537 = vunpack.c.h.b16 %v67
  %v538 = vunpack.c.l.b16 %v68
  %v539 = vunpack.c.h.b16 %v68
  %v540 = vunpack.c.l.b16 %v69
  %v541 = vunpack.c.h.b16 %v69
  %v542 = vunpack.c.l.b16 %v70
  %v543 = vunpack.c.h.b16 %v70
  %v544 = vunpack.c.l.b16 %v71
  %v545 = vunpack.c.h.b16 %v71
  %v546 = vunpack.c.l.b16 %v72
  %v547 = vunpack.c.h.b16 %v72
  %v548 = vunpack.c.l.b16 %v73
  %v549 = vunpack.c.h.b16 %v73
  %v550 = vunpack.c.l.b16 %v74
  %v551 = vunpack.c.h.b16 %v74
  %v552 = vunpack.c.l.b16 %v75
  %v553 = vunpack.c.h.b16 %v75
  %v554 = vunpack.c.l.b16 %v76
  %v555 = vunpack.c.h.b16 %v76
  %v556 = vunpack.c.l.b16 %v77
  %v557 = vunpack.c.h.b16 %v77
  %v558 = vunpack.c.l.b16 %v78
  %v559 = vunpack.c.h.b16 %v78
  %v560 = vunpack.c.l.b16 %v79
  %v561 = vunpack.c.h.b16 %v79
  %v562 = vunpack.c.l.b16 %v80
  %v563 = vunpack.c.h.b16 %v80
  %v564 = vunpack.c.l.b16 %v81
  %v565 = vunpack.c.h.b16 %v81
  %v566 = vunpack.c.l.b16 %v82
  %v567 = vunpack.c.h.b16 %v82
  %v568 = vunpack.c.l.b16 %v83
  %v569 = vunpack.c.h.b16 %v83
  %v570 = vunpack.c.l.b16 %v84
  %v571 = vunpack.c.h.b16 %v84
  %v572 = vunpack.c.l.b16 %v85
  %v573 = vunpack.c.h.b16 %v85
  %v574 = vunpack.c.l.b16 %v86
  %v575 = vunpack.c.h.b16 %v86
  %v576 = vunpack.c.l.b16 %v87
  %v577 = vunpack.c.h.b16 %v87
  %v578 = vunpack.c.l.b16 %v88
  %v579 = vunpack.c.h.b16 %v88
  %v580 = vunpack.c.l.b16 %v89
  %v581 = vunpack.c.h.b16 %v89
  %v582 = vunpack.c.l.b16 %v90
  %v583 = vunpack.c.h.b16 %v90
  %v584 = vunpack.c.l.b16 %v91
  %v585 = vunpack.c.h.b16 %v91
  %v586 = vunpack.c.l.b16 %v92
  %v587 = vunpack.c.h.b16 %v92
  %v588 = vunpack.c.l.b16 %v93
  %v589 = vunpack.c.h.b16 %v93
  %v590 = vunpack.c.l.b16 %v94
  %v591 = vunpack.c.h.b16 %v94
  %v592 = vunpack.c.l.b16 %v95
  %v593 = vunpack.c.h.b16 %v95
  %v594 = vunpack.c.l.b16 %v96
  %v595 = vunpack.c.h.b16 %v96
  %v596 = vunpack.c.l.b16 %v97
  %v597 = vunpack.c.h.b16 %v97
  %v598 = vunpack.c.l.b16 %v98
  %v599 = vunpack.c.h.b16 %v98
  %v600 = vunpack.c.l.b16 %v99
  %v601 = vunpack.c.h.b16 %v99
  %v602 = vunpack.c.l.b16 %v100
  %v603 = vunpack.c.h.b16 %v100
  %v604 = vunpack.c.l.b16 %v101
  %v605 = vunpack.c.h.b16 %v101
  %v606 = vunpack.c.l.b16 %v102
  %v607 = vunpack.c.h.b16 %v102
  %v608 = vunpack.c.l.b16 %v103
  %v609 = vunpack.c.h.b16 %v103
  %v610 = vunpack.c.l.b16 %v104
  %v611 = vunpack.c.h.b16 %v104
  %v612 = vunpack.c.l.b16 %v105
  %v613 = vunpack.c.h.b16 %v105
  %v614 = vunpack.c.l.b16 %v106
  %v615 = vunpack.c.h.b16 %v106
  %v616 = vunpack.c.l.b16 %v107
  %v617 = vunpack.c.h.b16 %v107
  %v618 = vunpack.c.l.b16 %v108
  %v619 = vunpack.c.h.b16 %v108
  %v620 = vunpack.c.l.b16 %v109
  %v621 = vunpack.c.h.b16 %v109
  %v622 = vunpack.c.l.b16 %v110
  %v623 = vunpack.c.h.b16 %v110
  %v624 = vunpack.c.l.b16 %v111
  %v625 = vunpack.c.h.b16 %v111
  %v626 = vunpack.c.l.b16 %v112
  %v627 = vunpack.c.h.b16 %v112
  %v628 = vunpack.c.l.b16 %v113
  %v629 = vunpack.c.h.b16 %v113
  %v630 = vunpack.c.l.b16 %v114
  %v631 = vunpack.c.h.b16 %v114
  %v632 = vunpack.c.l.b16 %v115
  %v633 = vunpack.c.h.b16 %v115
  %v634 = vunpack.c.l.b16 %v116
  %v635 = vunpack.c.h.b16 %v116
  %v636 = vunpack.c.l.b16 %v117
  %v637 = vunpack.c.h.b16 %v117
  %v638 = vunpack.c.l.b16 %v118
  %v639 = vunpack.c.h.b16 %v118
  %v640 = vunpack.c.l.b16 %v119
  %v641 = vunpack.c.h.b16 %v119
  %v642 = vunpack.c.l.b16 %v120
  %v643 = vunpack.c.h.b16 %v120
  %v644 = vunpack.c.l.b16 %v121
  %v645 = vunpack.c.h.b16 %v121
  %v646 = vunpack.c.l.b16 %v122
  %v647 = vunpack.c.h.b16 %v122
  %v648 = vunpack.c.l.b16 %v123
  %v649 = vunpack.c.h.b16 %v123
  %v650 = vunpack.c.l.b16 %v124
  %v651 = vunpack.c.h.b16 %v124
  %v652 = vunpack.c.l.b16 %v125
  %v653 = vunpack.c.h.b16 %v125
  %v654 = vunpack.c.l.b16 %v126
  %v655 = vunpack.c.h.b16 %v126
  %v656 = vunpack.c.l.b16 %v127
  %v657 = vunpack.c.h.b16 %v127
  %v658 = vunpack.c.l.b16 %v128
  %v659 = vunpack.c.h.b16 %v128
  %v660 = vunpack.c.l.b16 %v129
  %v661 = vunpack.c.h.b16 %v129
  %v662 = vunpack.c.l.b16 %v130
  %v663 = vunpack.c.h.b16 %v130
  %v664 = vunpack.c.l.b16 %v131
  %v665 = vunpack.c.h.b16 %v131
  %v666 = vunpack.c.l.b16 %v132
  %v667 = vunpack.c.h.b16 %v132
  %v668 = vunpack.c.l.b16 %v133
  %v669 = vunpack.c.h.b16 %v133
  %v670 = vunpack.c.l.b16 %v134
  %v671 = vunpack.c.h.b16 %v134
  %v672 = vunpack.c.l.b16 %v135
  %v673 = vunpack.c.h.b16 %v135
  %v674 = vunpack.c.l.b16 %v136
  %v675 = vunpack.c.h.b16 %v136
  %v676 = vunpack.c.l.b16 %v137
  %v677 = vunpack.c.h.b16 %v137
  %v678 = vunpack.c.l.b16 %v138
  %v679 = vunpack.c.h.b16 %v138
  %v680 = vunpack.c.l.b16 %v139
  %v681 = vunpack.c.h.b16 %v139
  %v682 = vunpack.c.l.b16 %v140
  %v683 = vunpack.c.h.b16 %v140
  %v684 = vunpack.c.l.b16 %v141
  %v685 = vunpack.c.h.b16 %v141
  %v686 = vunpack.c.l.b16 %v142
  %v687 = vunpack.c.h.b16 %v142
  %v688 = vunpack.c.l.b16 %v143
  %v689 = vunpack.c.h.b16 %v143
  %v690 = vunpack.c.l.b16 %v144
  %v691 = vunpack.c.h.b16 %v144
  %v692 = vunpack.c.l.b16 %v145
  %v693 = vunpack.c.h.b16 %v145
  %v694 = vunpack.c.l.b16 %v146
  %v695 = vunpack.c.h.b16 %v146
  %v696 = vunpack.c.l.b16 %v147
  %v697 = vunpack.c.h.b16 %v147
  %v698 = vunpack.c.l.b16 %v148
  %v699 = vunpack.c.h.b16 %v148
  %v700 = vunpack.c.l.b16 %v149
  %v701 = vunpack.c.h.b16 %v149
  %v702 = vunpack.c.l.b16 %v150
  %v703 = vunpack.c.h.b16 %v150
  %v704 = vunpack.c.l.b16 %v151
  %v705 = vunpack.c.h.b16 %v151
  %v706 = vunpack.c.l.b16 %v152
  %v707 = vunpack.c.h.b16 %v152
  %v708 = vunpack.c.l.b16 %v153
  %v709 = vunpack.c.h.b16 %v153
  %v710 = vunpack.c.l.b16 %v154
  %v711 = vunpack.c.h.b16 %v154
  %v712 = vunpack.c.l.b16 %v155
  %v713 = vunpack.c.h.b16 %v155
  %v714 = vunpack.c.l.b16 %v156
  %v715 = vunpack.c.h.b16 %v156
  %v716 = vunpack.c.l.b16 %v157
  %v717 = vunpack.c.h.b16 %v157
  %v718 = vunpack.c.l.b16 %v158
  %v719 = vunpack.c.h.b16 %v158
  %v720 = vunpack.c.l.b16 %v159
  %v721 = vunpack.c.h.b16 %v159
  %v722 = vunpack.c.l.b16 %v160
  %v723 = vunpack.c.h.b16 %v160
  %v724 = vunpack.c.l.b16 %v161
  %v725 = vunpack.c.h.b16 %v161
  %v726 = vunpack.c.l.b16 %v162
  %v727 = vunpack.c.h.b16 %v162
  %v728 = vunpack.c.l.b16 %v163
  %v729 = vunpack.c.h.b16 %v163
  %v730 = vunpack.c.l.b16 %v164
  %v731 = vunpack.c.h.b16 %v164
  %v732 = vunpack.c.l.b16 %v165
  %v733 = vunpack.c.h.b16 %v165
  %v734 = vunpack.c.l.b16 %v166
  %v735 = vunpack.c.h.b16 %v166
  %v736 = vunpack.c.l.b16 %v167
  %v737 = vunpack.c.h.b16 %v167
  %v738 = vunpack.c.l.b16 %v168
  %v739 = vunpack.c.h.b16 %v168
  %v740 = vunpack.c.l.b16 %v169
  %v741 = vunpack.c.h.b16 %v169
  %v742 = vunpack.c.l.b16 %v170
  %v743 = vunpack.c.h.b16 %v170
  %v744 = vunpack.c.l.b16 %v171
  %v745 = vunpack.c.h.b16 %v171
  %v746 = vunpack.c.l.b16 %v172
  %v747 = vunpack.c.h.b16 %v172
  %v748 = vunpack.c.l.b16 %v173
  %v749 = vunpack.c.h.b16 %v173
  %v750 = vunpack.c.l.b16 %v174
  %v751 = vunpack.c.h.b16 %v174
  %v752 = vunpack.c.l.b16 %v175
  %v753 = vunpack.c.h.b16 %v175
  %v754 = vunpack.c.l.b16 %v176
  %v755 = vunpack.c.h.b16 %v176
  %v756 = vunpack.c.l.b16 %v177
  %v757 = vunpack.c.h.b16 %v177
  %v758 = vunpack.c.l.b16 %v178
  %v759 = vunpack.c.h.b16 %v178
  %v760 = vunpack.c.l.b16 %v179
  %v761 = vunpack.c.h.b16 %v179
  %v762 = vunpack.c.l.b16 %v180
  %v763 = vunpack.c.h.b16 %v180
  %v764 = vunpack.c.l.b16 %v181
  %v765 = vunpack.c.h.b16 %v181
  %v766 = vpack.c.b16 %v514, %v510
  %v767 = vpack.c.b16 %v515, %v511
  %v768 = vpack.c.b16 %v516, %v512
  %v769 = vpack.c.b16 %v517, %v513
  %v770 = vpack.c.b16 %v522, %v518
  %v771 = vpack.c.b16 %v523, %v519
  %v772 = vpack.c.b16 %v524, %v520
  %v773 = vpack.c.b16 %v525, %v521
  %v774 = vpack.c.b16 %v530, %v526
  %v775 = vpack.c.b16 %v531, %v527
  %v776 = vpack.c.b16 %v532, %v528
  %v777 = vpack.c.b16 %v533, %v529
  %v778 = vpack.c.b16 %v538, %v534
  %v779 = vpack.c.b16 %v539, %v535
  %v780 = vpack.c.b16 %v540, %v536
  %v781 = vpack.c.b16 %v541, %v537
  %v782 = vpack.c.b16 %v546, %v542
  %v783 = vpack.c.b16 %v547, %v543
  %v784 = vpack.c.b16 %v548, %v544
  %v785 = vpack.c.b16 %v549, %v545
  %v786 = vpack.c.b16 %v554, %v550
  %v787 = vpack.c.b16 %v555, %v551
  %v788 = vpack.c.b16 %v556, %v552
  %v789 = vpack.c.b16 %v557, %v553
  %v790 = vpack.c.b16 %v562, %v558
  %v791 = vpack.c.b16 %v563, %v559
  %v792 = vpack.c.b16 %v564, %v560
  %v793 = vpack.c.b16 %v565, %v561
  %v794 = vpack.c.b16 %v570, %v566
  %v795 = vpack.c.b16 %v571, %v567
  %v796 = vpack.c.b16 %v572, %v568
  %v797 = vpack.c.b16 %v573, %v569
  %v798 = vpack.c.b16 %v578, %v574
  %v799 = vpack.c.b16 %v579, %v575
  %v800 = vpack.c.b16 %v580, %v576
  %v801 = vpack.c.b16 %v581, %v577
  %v802 = vpack.c.b16 %v586, %v582
  %v803 = vpack.c.b16 %v587, %v583
  %v804 = vpack.c.b16 %v588, %v584
  %v805 = vpack.c.b16 %v589, %v585
  %v806 = vpack.c.b16 %v594, %v590
  %v807 = vpack.c.b16 %v595, %v591
  %v808 = vpack.c.b16 %v596, %v592
  %v809 = vpack.c.b16 %v597, %v593
  %v810 = vpack.c.b16 %v602, %v598
  %v811 = vpack.c.b16 %v603, %v599
  %v812 = vpack.c.b16 %v604, %v600
  %v813 = vpack.c.b16 %v605, %v601
  %v814 = vpack.c.b16 %v610, %v606
  %v815 = vpack.c.b16 %v611, %v607
  %v816 = vpack.c.b16 %v612, %v608
  %v817 = vpack.c.b16 %v613, %v609
  %v818 = vpack.c.b16 %v618, %v614
  %v819 = vpack.c.b16 %v619, %v615
  %v820 = vpack.c.b16 %v620, %v616
  %v821 = vpack.c.b16 %v621, %v617
  %v822 = vpack.c.b16 %v626, %v622
  %v823 = vpack.c.b16 %v627, %v623
  %v824 = vpack.c.b16 %v628, %v624
  %v825 = vpack.c.b16 %v629, %v625
  %v826 = vpack.c.b16 %v634, %v630
  %v827 = vpack.c.b16 %v635, %v631
  %v828 = vpack.c.b16 %v636, %v632
  %v829 = vpack.c.b16 %v637, %v633
  %v830 = vpack.c.b16 %v642, %v638
  %v831 = vpack.c.b16 %v643, %v639
  %v832 = vpack.c.b16 %v644, %v640
  %v833 = vpack.c.b16 %v645, %v641
  %v834 = vpack.c.b16 %v650, %v646
  %v835 = vpack.c.b16 %v651, %v647
  %v836 = vpack.c.b16 %v652, %v648
  %v837 = vpack.c.b16 %v653, %v649
  %v838 = vpack.c.b16 %v658, %v654
  %v839 = vpack.c.b16 %v659, %v655
  %v840 = vpack.c.b16 %v660, %v656
  %v841 = vpack.c.b16 %v661, %v657
  %v842 = vpack.c.b16 %v666, %v662
  %v843 = vpack.c.b16 %v667, %v663
  %v844 = vpack.c.b16 %v668, %v664
  %v845 = vpack.c.b16 %v669, %v665
  %v846 = vpack.c.b16 %v674, %v670
  %v847 = vpack.c.b16 %v675, %v671
  %v848 = vpack.c.b16 %v676, %v672
  %v849 = vpack.c.b16 %v677, %v673
  %v850 = vpack.c.b16 %v682, %v678
  %v851 = vpack.c.b16 %v683, %v679
  %v852 = vpack.c.b16 %v684, %v680
  %v853 = vpack.c.b16 %v685, %v681
  %v854 = vpack.c.b16 %v690, %v686
  %v855 = vpack.c.b16 %v691, %v687
  %v856 = vpack.c.b16 %v692, %v688
  %v857 = vpack.c.b16 %v693, %v689
  %v858 = vpack.c.b16 %v698, %v694
  %v859 = vpack.c.b16 %v699, %v695
  %v860 = vpack.c.b16 %v700, %v696
  %v861 = vpack.c.b16 %v701, %v697
  %v862 = vpack.c.b16 %v706, %v702
  %v863 = vpack.c.b16 %v707, %v703
  %v864 = vpack.c.b16 %v708, %v704
  %v865 = vpack.c.b16 %v709, %v705
  %v866 = vpack.c.b16 %v714, %v710
  %v867 = vpack.c.b16 %v715, %v711
  %v868 = vpack.c.b16 %v716, %v712
  %v869 = vpack.c.b16 %v717, %v713
  %v870 = vpack.c.b16 %v722, %v718
  %v871 = vpack.c.b16 %v723, %v719
  %v872 = vpack.c.b16 %v724, %v720
  %v873 = vpack.c.b16 %v725, %v721
  %v874 = vpack.c.b16 %v730, %v726
  %v875 = vpack.c.b16 %v731, %v727
  %v876 = vpack.c.b16 %v732, %v728
  %v877 = vpack.c.b16 %v733, %v729
  %v878 = vpack.c.b16 %v738, %v734
  %v879 = vpack.c.b16 %v739, %v735
  %v880 = vpack.c.b16 %v740, %v736
  %v881 = vpack.c.b16 %v741, %v737
  %v882 = vpack.c.b16 %v746, %v742
  %v883 = vpack.c.b16 %v747, %v743
  %v884 = vpack.c.b16 %v748, %v744
  %v885 = vpack.c.b16 %v749, %v745
  %v886 = vpack.c.b16 %v754, %v750
  %v887 = vpack.c.b16 %v755, %v751
  %v888 = vpack.c.b16 %v756, %v752
  %v889 = vpack.c.b16 %v757, %v753
  %v890 = vpack.c.b16 %v762, %v758
  %v891 = vpack.c.b16 %v763, %v759
  %v892 = vpack.c.b16 %v764, %v760
  %v893 = vpack.c.b16 %v765, %v761
  %1022 = vmatprep.subr.bf16.mxu0 %v767
  %1023 = vmatpush1.bf16.msra.mxu0 %v766
  %1024 = vmatprep.subr.bf16.mxu0 %v771
  %1025 = vmatpush1.bf16.msra.mxu0 %v770
  %1026 = vmatprep.subr.bf16.mxu0 %v775
  %1027 = vmatpush1.bf16.msra.mxu0 %v774
  %1028 = vmatprep.subr.bf16.mxu0 %v779
  %1029 = vmatpush1.bf16.msra.mxu0 %v778
  %1030 = vmatprep.subr.bf16.mxu0 %v783
  %1031 = vmatpush1.bf16.msra.mxu0 %v782
  %1032 = vmatprep.subr.bf16.mxu0 %v787
  %1033 = vmatpush1.bf16.msra.mxu0 %v786
  %1034 = vmatprep.subr.bf16.mxu0 %v791
  %1035 = vmatpush1.bf16.msra.mxu0 %v790
  %1036 = vmatprep.subr.bf16.mxu0 %v795
  %1037 = vmatpush1.bf16.msra.mxu0 %v794
  %1038 = vmatprep.subr.bf16.mxu0 %v799
  %1039 = vmatpush1.bf16.msra.mxu0 %v798
  %1040 = vmatprep.subr.bf16.mxu0 %v803
  %1041 = vmatpush1.bf16.msra.mxu0 %v802
  %1042 = vmatprep.subr.bf16.mxu0 %v807
  %1043 = vmatpush1.bf16.msra.mxu0 %v806
  %1044 = vmatprep.subr.bf16.mxu0 %v811
  %1045 = vmatpush1.bf16.msra.mxu0 %v810
  %1046 = vmatprep.subr.bf16.mxu0 %v815
  %1047 = vmatpush1.bf16.msra.mxu0 %v814
  %1048 = vmatprep.subr.bf16.mxu0 %v819
  %1049 = vmatpush1.bf16.msra.mxu0 %v818
  %1050 = vmatprep.subr.bf16.mxu0 %v823
  %1051 = vmatpush1.bf16.msra.mxu0 %v822
  %1052 = vmatprep.subr.bf16.mxu0 %v827
  %1053 = vmatpush1.bf16.msra.mxu0 %v826
  %1054 = vmatprep.mubr.bf16.mxu0 %v303
  %1055 = vmatmul.mubr.bf16.gmra.mrb[0].mxu0 %v302
  %v1056 = vpop.f32.mrb[0].mxu0
  %v1057 = vadd.f32 0.0, %v1056
  %v1058 = vpop.f32.mrb[0].mxu0
  %v1059 = vadd.f32 0.0, %v1058
  %v1060 = vpop.f32.mrb[0].mxu0
  %v1061 = vadd.f32 0.0, %v1060
  %v1062 = vpop.f32.mrb[0].mxu0
  %v1063 = vadd.f32 0.0, %v1062
  %1064 = vmatprep.mubr.bf16.mxu0 %v307
  %1065 = vmatmul.mubr.bf16.gmra.mrb[0].mxu0 %v306
  %v1066 = vpop.f32.mrb[0].mxu0
  %v1067 = vadd.f32 0.0, %v1066
  %v1068 = vpop.f32.mrb[0].mxu0
  %v1069 = vadd.f32 0.0, %v1068
  %v1070 = vpop.f32.mrb[0].mxu0
  %v1071 = vadd.f32 0.0, %v1070
  %v1072 = vpop.f32.mrb[0].mxu0
  %v1073 = vadd.f32 0.0, %v1072
  %1074 = vmatprep.mubr.bf16.mxu0 %v311
  %1075 = vmatmul.mubr.bf16.gmra.mrb[0].mxu0 %v310
  %v1076 = vpop.f32.mrb[0].mxu0
  %v1077 = vadd.f32 0.0, %v1076
  %v1078 = vpop.f32.mrb[0].mxu0
  %v1079 = vadd.f32 0.0, %v1078
  %v1080 = vpop.f32.mrb[0].mxu0
  %v1081 = vadd.f32 0.0, %v1080
  %v1082 = vpop.f32.mrb[0].mxu0
  %v1083 = vadd.f32 0.0, %v1082
  %1084 = vmatprep.mubr.bf16.mxu0 %v315
  %1085 = vmatmul.mubr.bf16.gmra.mrb[0].mxu0 %v314
  %v1086 = vpop.f32.mrb[0].mxu0
  %v1087 = vadd.f32 0.0, %v1086
  %v1088 = vpop.f32.mrb[0].mxu0
  %v1089 = vadd.f32 0.0, %v1088
  %v1090 = vpop.f32.mrb[0].mxu0
  %v1091 = vadd.f32 0.0, %v1090
  %v1092 = vpop.f32.mrb[0].mxu0
  %v1093 = vadd.f32 0.0, %v1092
  %1094 = vmatprep.mubr.bf16.mxu0 %v319
  %1095 = vmatmul.mubr.bf16.gmra.mrb[0].mxu0 %v318
  %v1096 = vpop.f32.mrb[0].mxu0
  %v1097 = vadd.f32 0.0, %v1096
  %v1098 = vpop.f32.mrb[0].mxu0
  %v1099 = vadd.f32 0.0, %v1098
  %v1100 = vpop.f32.mrb[0].mxu0
  %v1101 = vadd.f32 0.0, %v1100
  %v1102 = vpop.f32.mrb[0].mxu0
  %v1103 = vadd.f32 0.0, %v1102
  %1104 = vmatprep.mubr.bf16.mxu0 %v323
  %1105 = vmatmul.mubr.bf16.gmra.mrb[0].mxu0 %v322
  %v1106 = vpop.f32.mrb[0].mxu0
  %v1107 = vadd.f32 0.0, %v1106
  %v1108 = vpop.f32.mrb[0].mxu0
  %v1109 = vadd.f32 0.0, %v1108
  %v1110 = vpop.f32.mrb[0].mxu0
  %v1111 = vadd.f32 0.0, %v1110
  %v1112 = vpop.f32.mrb[0].mxu0
  %v1113 = vadd.f32 0.0, %v1112
  %1114 = vmatprep.mubr.bf16.mxu0 %v327
  %1115 = vmatmul.mubr.bf16.gmra.mrb[0].mxu0 %v326
  %v1116 = vpop.f32.mrb[0].mxu0
  %v1117 = vadd.f32 0.0, %v1116
  %v1118 = vpop.f32.mrb[0].mxu0
  %v1119 = vadd.f32 0.0, %v1118
  %v1120 = vpop.f32.mrb[0].mxu0
  %v1121 = vadd.f32 0.0, %v1120
  %v1122 = vpop.f32.mrb[0].mxu0
  %v1123 = vadd.f32 0.0, %v1122
  %1124 = vmatprep.mubr.bf16.mxu0 %v331
  %1125 = vmatmul.mubr.bf16.gmra.mrb[0].mxu0 %v330
  %v1126 = vpop.f32.mrb[0].mxu0
  %v1127 = vadd.f32 0.0, %v1126
  %v1128 = vpop.f32.mrb[0].mxu0
  %v1129 = vadd.f32 0.0, %v1128
  %v1130 = vpop.f32.mrb[0].mxu0
  %v1131 = vadd.f32 0.0, %v1130
  %v1132 = vpop.f32.mrb[0].mxu0
  %v1133 = vadd.f32 0.0, %v1132
  %1134 = vmatprep.mubr.bf16.mxu0 %v335
  %1135 = vmatmul.mubr.bf16.gmra.mrb[0].mxu0 %v334
  %v1136 = vpop.f32.mrb[0].mxu0
  %v1137 = vadd.f32 0.0, %v1136
  %v1138 = vpop.f32.mrb[0].mxu0
  %v1139 = vadd.f32 0.0, %v1138
  %v1140 = vpop.f32.mrb[0].mxu0
  %v1141 = vadd.f32 0.0, %v1140
  %v1142 = vpop.f32.mrb[0].mxu0
  %v1143 = vadd.f32 0.0, %v1142
  %1144 = vmatprep.mubr.bf16.mxu0 %v339
  %1145 = vmatmul.mubr.bf16.gmra.mrb[0].mxu0 %v338
  %v1146 = vpop.f32.mrb[0].mxu0
  %v1147 = vadd.f32 0.0, %v1146
  %v1148 = vpop.f32.mrb[0].mxu0
  %v1149 = vadd.f32 0.0, %v1148
  %v1150 = vpop.f32.mrb[0].mxu0
  %v1151 = vadd.f32 0.0, %v1150
  %v1152 = vpop.f32.mrb[0].mxu0
  %v1153 = vadd.f32 0.0, %v1152
  %1154 = vdwg.mxu0
  %1155 = vmatprep.subr.bf16.mxu0 %v831
  %1156 = vmatpush1.bf16.msra.mxu0 %v830
  %1157 = vmatprep.subr.bf16.mxu0 %v835
  %1158 = vmatpush1.bf16.msra.mxu0 %v834
  %1159 = vmatprep.subr.bf16.mxu0 %v839
  %1160 = vmatpush1.bf16.msra.mxu0 %v838
  %1161 = vmatprep.subr.bf16.mxu0 %v843
  %1162 = vmatpush1.bf16.msra.mxu0 %v842
  %1163 = vmatprep.subr.bf16.mxu0 %v847
  %1164 = vmatpush1.bf16.msra.mxu0 %v846
  %1165 = vmatprep.subr.bf16.mxu0 %v851
  %1166 = vmatpush1.bf16.msra.mxu0 %v850
  %1167 = vmatprep.subr.bf16.mxu0 %v855
  %1168 = vmatpush1.bf16.msra.mxu0 %v854
  %1169 = vmatprep.subr.bf16.mxu0 %v859
  %1170 = vmatpush1.bf16.msra.mxu0 %v858
  %1171 = vmatprep.subr.bf16.mxu0 %v863
  %1172 = vmatpush1.bf16.msra.mxu0 %v862
  %1173 = vmatprep.subr.bf16.mxu0 %v867
  %1174 = vmatpush1.bf16.msra.mxu0 %v866
  %1175 = vmatprep.subr.bf16.mxu0 %v871
  %1176 = vmatpush1.bf16.msra.mxu0 %v870
  %1177 = vmatprep.subr.bf16.mxu0 %v875
  %1178 = vmatpush1.bf16.msra.mxu0 %v874
  %1179 = vmatprep.subr.bf16.mxu0 %v879
  %1180 = vmatpush1.bf16.msra.mxu0 %v878
  %1181 = vmatprep.subr.bf16.mxu0 %v883
  %1182 = vmatpush1.bf16.msra.mxu0 %v882
  %1183 = vmatprep.subr.bf16.mxu0 %v887
  %1184 = vmatpush1.bf16.msra.mxu0 %v886
  %1185 = vmatprep.subr.bf16.mxu0 %v891
  %1186 = vmatpush1.bf16.msra.mxu0 %v890
  %1187 = vmatprep.mubr.bf16.mxu0 %v305
  %1188 = vmatmul.mubr.bf16.gmra.mrb[0].mxu0 %v304
  %v1189 = vpop.f32.mrb[0].mxu0
  %v1190 = vadd.f32 %v1057, %v1189
  %v1191 = vpop.f32.mrb[0].mxu0
  %v1192 = vadd.f32 %v1059, %v1191
  %v1193 = vpop.f32.mrb[0].mxu0
  %v1194 = vadd.f32 %v1061, %v1193
  %v1195 = vpop.f32.mrb[0].mxu0
  %v1196 = vadd.f32 %v1063, %v1195
  %1197 = vmatprep.mubr.bf16.mxu0 %v309
  %1198 = vmatmul.mubr.bf16.gmra.mrb[0].mxu0 %v308
  %v1199 = vpop.f32.mrb[0].mxu0
  %v1200 = vadd.f32 %v1067, %v1199
  %v1201 = vpop.f32.mrb[0].mxu0
  %v1202 = vadd.f32 %v1069, %v1201
  %v1203 = vpop.f32.mrb[0].mxu0
  %v1204 = vadd.f32 %v1071, %v1203
  %v1205 = vpop.f32.mrb[0].mxu0
  %v1206 = vadd.f32 %v1073, %v1205
  %1207 = vmatprep.mubr.bf16.mxu0 %v313
  %1208 = vmatmul.mubr.bf16.gmra.mrb[0].mxu0 %v312
  %v1209 = vpop.f32.mrb[0].mxu0
  %v1210 = vadd.f32 %v1077, %v1209
  %v1211 = vpop.f32.mrb[0].mxu0
  %v1212 = vadd.f32 %v1079, %v1211
  %v1213 = vpop.f32.mrb[0].mxu0
  %v1214 = vadd.f32 %v1081, %v1213
  %v1215 = vpop.f32.mrb[0].mxu0
  %v1216 = vadd.f32 %v1083, %v1215
  %1217 = vmatprep.mubr.bf16.mxu0 %v317
  %1218 = vmatmul.mubr.bf16.gmra.mrb[0].mxu0 %v316
  %v1219 = vpop.f32.mrb[0].mxu0
  %v1220 = vadd.f32 %v1087, %v1219
  %v1221 = vpop.f32.mrb[0].mxu0
  %v1222 = vadd.f32 %v1089, %v1221
  %v1223 = vpop.f32.mrb[0].mxu0
  %v1224 = vadd.f32 %v1091, %v1223
  %v1225 = vpop.f32.mrb[0].mxu0
  %v1226 = vadd.f32 %v1093, %v1225
  %1227 = vmatprep.mubr.bf16.mxu0 %v321
  %1228 = vmatmul.mubr.bf16.gmra.mrb[0].mxu0 %v320
  %v1229 = vpop.f32.mrb[0].mxu0
  %v1230 = vadd.f32 %v1097, %v1229
  %v1231 = vpop.f32.mrb[0].mxu0
  %v1232 = vadd.f32 %v1099, %v1231
  %v1233 = vpop.f32.mrb[0].mxu0
  %v1234 = vadd.f32 %v1101, %v1233
  %v1235 = vpop.f32.mrb[0].mxu0
  %v1236 = vadd.f32 %v1103, %v1235
  %1237 = vmatprep.mubr.bf16.mxu0 %v325
  %1238 = vmatmul.mubr.bf16.gmra.mrb[0].mxu0 %v324
  %v1239 = vpop.f32.mrb[0].mxu0
  %v1240 = vadd.f32 %v1107, %v1239
  %v1241 = vpop.f32.mrb[0].mxu0
  %v1242 = vadd.f32 %v1109, %v1241
  %v1243 = vpop.f32.mrb[0].mxu0
  %v1244 = vadd.f32 %v1111, %v1243
  %v1245 = vpop.f32.mrb[0].mxu0
  %v1246 = vadd.f32 %v1113, %v1245
  %1247 = vmatprep.mubr.bf16.mxu0 %v329
  %1248 = vmatmul.mubr.bf16.gmra.mrb[0].mxu0 %v328
  %v1249 = vpop.f32.mrb[0].mxu0
  %v1250 = vadd.f32 %v1117, %v1249
  %v1251 = vpop.f32.mrb[0].mxu0
  %v1252 = vadd.f32 %v1119, %v1251
  %v1253 = vpop.f32.mrb[0].mxu0
  %v1254 = vadd.f32 %v1121, %v1253
  %v1255 = vpop.f32.mrb[0].mxu0
  %v1256 = vadd.f32 %v1123, %v1255
  %1257 = vmatprep.mubr.bf16.mxu0 %v333
  %1258 = vmatmul.mubr.bf16.gmra.mrb[0].mxu0 %v332
  %v1259 = vpop.f32.mrb[0].mxu0
  %v1260 = vadd.f32 %v1127, %v1259
  %v1261 = vpop.f32.mrb[0].mxu0
  %v1262 = vadd.f32 %v1129, %v1261
  %v1263 = vpop.f32.mrb[0].mxu0
  %v1264 = vadd.f32 %v1131, %v1263
  %v1265 = vpop.f32.mrb[0].mxu0
  %v1266 = vadd.f32 %v1133, %v1265
  %1267 = vmatprep.mubr.bf16.mxu0 %v337
  %1268 = vmatmul.mubr.bf16.gmra.mrb[0].mxu0 %v336
  %v1269 = vpop.f32.mrb[0].mxu0
  %v1270 = vadd.f32 %v1137, %v1269
  %v1271 = vpop.f32.mrb[0].mxu0
  %v1272 = vadd.f32 %v1139, %v1271
  %v1273 = vpop.f32.mrb[0].mxu0
  %v1274 = vadd.f32 %v1141, %v1273
  %v1275 = vpop.f32.mrb[0].mxu0
  %v1276 = vadd.f32 %v1143, %v1275
  %1277 = vmatprep.mubr.bf16.mxu0 %v341
  %1278 = vmatmul.mubr.bf16.gmra.mrb[0].mxu0 %v340
  %v1279 = vpop.f32.mrb[0].mxu0
  %v1280 = vadd.f32 %v1147, %v1279
  %v1281 = vpop.f32.mrb[0].mxu0
  %v1282 = vadd.f32 %v1149, %v1281
  %v1283 = vpop.f32.mrb[0].mxu0
  %v1284 = vadd.f32 %v1151, %v1283
  %v1285 = vpop.f32.mrb[0].mxu0
  %v1286 = vadd.f32 %v1153, %v1285
  %1287 = vdwg.mxu0
  %1288 = vmatprep.subr.bf16.mxu0 %v769
  %1289 = vmatpush1.bf16.msra.mxu0 %v768
  %1290 = vmatprep.subr.bf16.mxu0 %v773
  %1291 = vmatpush1.bf16.msra.mxu0 %v772
  %1292 = vmatprep.subr.bf16.mxu0 %v777
  %1293 = vmatpush1.bf16.msra.mxu0 %v776
  %1294 = vmatprep.subr.bf16.mxu0 %v781
  %1295 = vmatpush1.bf16.msra.mxu0 %v780
  %1296 = vmatprep.subr.bf16.mxu0 %v785
  %1297 = vmatpush1.bf16.msra.mxu0 %v784
  %1298 = vmatprep.subr.bf16.mxu0 %v789
  %1299 = vmatpush1.bf16.msra.mxu0 %v788
  %1300 = vmatprep.subr.bf16.mxu0 %v793
  %1301 = vmatpush1.bf16.msra.mxu0 %v792
  %1302 = vmatprep.subr.bf16.mxu0 %v797
  %1303 = vmatpush1.bf16.msra.mxu0 %v796
  %1304 = vmatprep.subr.bf16.mxu0 %v801
  %1305 = vmatpush1.bf16.msra.mxu0 %v800
  %1306 = vmatprep.subr.bf16.mxu0 %v805
  %1307 = vmatpush1.bf16.msra.mxu0 %v804
  %1308 = vmatprep.subr.bf16.mxu0 %v809
  %1309 = vmatpush1.bf16.msra.mxu0 %v808
  %1310 = vmatprep.subr.bf16.mxu0 %v813
  %1311 = vmatpush1.bf16.msra.mxu0 %v812
  %1312 = vmatprep.subr.bf16.mxu0 %v817
  %1313 = vmatpush1.bf16.msra.mxu0 %v816
  %1314 = vmatprep.subr.bf16.mxu0 %v821
  %1315 = vmatpush1.bf16.msra.mxu0 %v820
  %1316 = vmatprep.subr.bf16.mxu0 %v825
  %1317 = vmatpush1.bf16.msra.mxu0 %v824
  %1318 = vmatprep.subr.bf16.mxu0 %v829
  %1319 = vmatpush1.bf16.msra.mxu0 %v828
  %1320 = vmatprep.mubr.bf16.mxu0 %v303
  %1321 = vmatmul.mubr.bf16.gmra.mrb[0].mxu0 %v302
  %v1322 = vpop.f32.mrb[0].mxu0
  %v1323 = vadd.f32 0.0, %v1322
  %v1324 = vpop.f32.mrb[0].mxu0
  %v1325 = vadd.f32 0.0, %v1324
  %v1326 = vpop.f32.mrb[0].mxu0
  %v1327 = vadd.f32 0.0, %v1326
  %v1328 = vpop.f32.mrb[0].mxu0
  %v1329 = vadd.f32 0.0, %v1328
  %1330 = vmatprep.mubr.bf16.mxu0 %v307
  %1331 = vmatmul.mubr.bf16.gmra.mrb[0].mxu0 %v306
  %v1332 = vpop.f32.mrb[0].mxu0
  %v1333 = vadd.f32 0.0, %v1332
  %v1334 = vpop.f32.mrb[0].mxu0
  %v1335 = vadd.f32 0.0, %v1334
  %v1336 = vpop.f32.mrb[0].mxu0
  %v1337 = vadd.f32 0.0, %v1336
  %v1338 = vpop.f32.mrb[0].mxu0
  %v1339 = vadd.f32 0.0, %v1338
  %1340 = vmatprep.mubr.bf16.mxu0 %v311
  %1341 = vmatmul.mubr.bf16.gmra.mrb[0].mxu0 %v310
  %v1342 = vpop.f32.mrb[0].mxu0
  %v1343 = vadd.f32 0.0, %v1342
  %v1344 = vpop.f32.mrb[0].mxu0
  %v1345 = vadd.f32 0.0, %v1344
  %v1346 = vpop.f32.mrb[0].mxu0
  %v1347 = vadd.f32 0.0, %v1346
  %v1348 = vpop.f32.mrb[0].mxu0
  %v1349 = vadd.f32 0.0, %v1348
  %1350 = vmatprep.mubr.bf16.mxu0 %v315
  %1351 = vmatmul.mubr.bf16.gmra.mrb[0].mxu0 %v314
  %v1352 = vpop.f32.mrb[0].mxu0
  %v1353 = vadd.f32 0.0, %v1352
  %v1354 = vpop.f32.mrb[0].mxu0
  %v1355 = vadd.f32 0.0, %v1354
  %v1356 = vpop.f32.mrb[0].mxu0
  %v1357 = vadd.f32 0.0, %v1356
  %v1358 = vpop.f32.mrb[0].mxu0
  %v1359 = vadd.f32 0.0, %v1358
  %1360 = vmatprep.mubr.bf16.mxu0 %v319
  %1361 = vmatmul.mubr.bf16.gmra.mrb[0].mxu0 %v318
  %v1362 = vpop.f32.mrb[0].mxu0
  %v1363 = vadd.f32 0.0, %v1362
  %v1364 = vpop.f32.mrb[0].mxu0
  %v1365 = vadd.f32 0.0, %v1364
  %v1366 = vpop.f32.mrb[0].mxu0
  %v1367 = vadd.f32 0.0, %v1366
  %v1368 = vpop.f32.mrb[0].mxu0
  %v1369 = vadd.f32 0.0, %v1368
  %1370 = vmatprep.mubr.bf16.mxu0 %v323
  %1371 = vmatmul.mubr.bf16.gmra.mrb[0].mxu0 %v322
  %v1372 = vpop.f32.mrb[0].mxu0
  %v1373 = vadd.f32 0.0, %v1372
  %v1374 = vpop.f32.mrb[0].mxu0
  %v1375 = vadd.f32 0.0, %v1374
  %v1376 = vpop.f32.mrb[0].mxu0
  %v1377 = vadd.f32 0.0, %v1376
  %v1378 = vpop.f32.mrb[0].mxu0
  %v1379 = vadd.f32 0.0, %v1378
  %1380 = vmatprep.mubr.bf16.mxu0 %v327
  %1381 = vmatmul.mubr.bf16.gmra.mrb[0].mxu0 %v326
  %v1382 = vpop.f32.mrb[0].mxu0
  %v1383 = vadd.f32 0.0, %v1382
  %v1384 = vpop.f32.mrb[0].mxu0
  %v1385 = vadd.f32 0.0, %v1384
  %v1386 = vpop.f32.mrb[0].mxu0
  %v1387 = vadd.f32 0.0, %v1386
  %v1388 = vpop.f32.mrb[0].mxu0
  %v1389 = vadd.f32 0.0, %v1388
  %1390 = vmatprep.mubr.bf16.mxu0 %v331
  %1391 = vmatmul.mubr.bf16.gmra.mrb[0].mxu0 %v330
  %v1392 = vpop.f32.mrb[0].mxu0
  %v1393 = vadd.f32 0.0, %v1392
  %v1394 = vpop.f32.mrb[0].mxu0
  %v1395 = vadd.f32 0.0, %v1394
  %v1396 = vpop.f32.mrb[0].mxu0
  %v1397 = vadd.f32 0.0, %v1396
  %v1398 = vpop.f32.mrb[0].mxu0
  %v1399 = vadd.f32 0.0, %v1398
  %1400 = vmatprep.mubr.bf16.mxu0 %v335
  %1401 = vmatmul.mubr.bf16.gmra.mrb[0].mxu0 %v334
  %v1402 = vpop.f32.mrb[0].mxu0
  %v1403 = vadd.f32 0.0, %v1402
  %v1404 = vpop.f32.mrb[0].mxu0
  %v1405 = vadd.f32 0.0, %v1404
  %v1406 = vpop.f32.mrb[0].mxu0
  %v1407 = vadd.f32 0.0, %v1406
  %v1408 = vpop.f32.mrb[0].mxu0
  %v1409 = vadd.f32 0.0, %v1408
  %1410 = vmatprep.mubr.bf16.mxu0 %v339
  %1411 = vmatmul.mubr.bf16.gmra.mrb[0].mxu0 %v338
  %v1412 = vpop.f32.mrb[0].mxu0
  %v1413 = vadd.f32 0.0, %v1412
  %v1414 = vpop.f32.mrb[0].mxu0
  %v1415 = vadd.f32 0.0, %v1414
  %v1416 = vpop.f32.mrb[0].mxu0
  %v1417 = vadd.f32 0.0, %v1416
  %v1418 = vpop.f32.mrb[0].mxu0
  %v1419 = vadd.f32 0.0, %v1418
  %1420 = vdwg.mxu0
  %1421 = vmatprep.subr.bf16.mxu0 %v833
  %1422 = vmatpush1.bf16.msra.mxu0 %v832
  %1423 = vmatprep.subr.bf16.mxu0 %v837
  %1424 = vmatpush1.bf16.msra.mxu0 %v836
  %1425 = vmatprep.subr.bf16.mxu0 %v841
  %1426 = vmatpush1.bf16.msra.mxu0 %v840
  %1427 = vmatprep.subr.bf16.mxu0 %v845
  %1428 = vmatpush1.bf16.msra.mxu0 %v844
  %1429 = vmatprep.subr.bf16.mxu0 %v849
  %1430 = vmatpush1.bf16.msra.mxu0 %v848
  %1431 = vmatprep.subr.bf16.mxu0 %v853
  %1432 = vmatpush1.bf16.msra.mxu0 %v852
  %1433 = vmatprep.subr.bf16.mxu0 %v857
  %1434 = vmatpush1.bf16.msra.mxu0 %v856
  %1435 = vmatprep.subr.bf16.mxu0 %v861
  %1436 = vmatpush1.bf16.msra.mxu0 %v860
  %1437 = vmatprep.subr.bf16.mxu0 %v865
  %1438 = vmatpush1.bf16.msra.mxu0 %v864
  %1439 = vmatprep.subr.bf16.mxu0 %v869
  %1440 = vmatpush1.bf16.msra.mxu0 %v868
  %1441 = vmatprep.subr.bf16.mxu0 %v873
  %1442 = vmatpush1.bf16.msra.mxu0 %v872
  %1443 = vmatprep.subr.bf16.mxu0 %v877
  %1444 = vmatpush1.bf16.msra.mxu0 %v876
  %1445 = vmatprep.subr.bf16.mxu0 %v881
  %1446 = vmatpush1.bf16.msra.mxu0 %v880
  %1447 = vmatprep.subr.bf16.mxu0 %v885
  %1448 = vmatpush1.bf16.msra.mxu0 %v884
  %1449 = vmatprep.subr.bf16.mxu0 %v889
  %1450 = vmatpush1.bf16.msra.mxu0 %v888
  %1451 = vmatprep.subr.bf16.mxu0 %v893
  %1452 = vmatpush1.bf16.msra.mxu0 %v892
  %1453 = vmatprep.mubr.bf16.mxu0 %v305
  %1454 = vmatmul.mubr.bf16.gmra.mrb[0].mxu0 %v304
  %v1455 = vpop.f32.mrb[0].mxu0
  %v1456 = vadd.f32 %v1323, %v1455
  %v1457 = vpop.f32.mrb[0].mxu0
  %v1458 = vadd.f32 %v1325, %v1457
  %v1459 = vpop.f32.mrb[0].mxu0
  %v1460 = vadd.f32 %v1327, %v1459
  %v1461 = vpop.f32.mrb[0].mxu0
  %v1462 = vadd.f32 %v1329, %v1461
  %1463 = vmatprep.mubr.bf16.mxu0 %v309
  %1464 = vmatmul.mubr.bf16.gmra.mrb[0].mxu0 %v308
  %v1465 = vpop.f32.mrb[0].mxu0
  %v1466 = vadd.f32 %v1333, %v1465
  %v1467 = vpop.f32.mrb[0].mxu0
  %v1468 = vadd.f32 %v1335, %v1467
  %v1469 = vpop.f32.mrb[0].mxu0
  %v1470 = vadd.f32 %v1337, %v1469
  %v1471 = vpop.f32.mrb[0].mxu0
  %v1472 = vadd.f32 %v1339, %v1471
  %1473 = vmatprep.mubr.bf16.mxu0 %v313
  %1474 = vmatmul.mubr.bf16.gmra.mrb[0].mxu0 %v312
  %v1475 = vpop.f32.mrb[0].mxu0
  %v1476 = vadd.f32 %v1343, %v1475
  %v1477 = vpop.f32.mrb[0].mxu0
  %v1478 = vadd.f32 %v1345, %v1477
  %v1479 = vpop.f32.mrb[0].mxu0
  %v1480 = vadd.f32 %v1347, %v1479
  %v1481 = vpop.f32.mrb[0].mxu0
  %v1482 = vadd.f32 %v1349, %v1481
  %1483 = vmatprep.mubr.bf16.mxu0 %v317
  %1484 = vmatmul.mubr.bf16.gmra.mrb[0].mxu0 %v316
  %v1485 = vpop.f32.mrb[0].mxu0
  %v1486 = vadd.f32 %v1353, %v1485
  %v1487 = vpop.f32.mrb[0].mxu0
  %v1488 = vadd.f32 %v1355, %v1487
  %v1489 = vpop.f32.mrb[0].mxu0
  %v1490 = vadd.f32 %v1357, %v1489
  %v1491 = vpop.f32.mrb[0].mxu0
  %v1492 = vadd.f32 %v1359, %v1491
  %1493 = vmatprep.mubr.bf16.mxu0 %v321
  %1494 = vmatmul.mubr.bf16.gmra.mrb[0].mxu0 %v320
  %v1495 = vpop.f32.mrb[0].mxu0
  %v1496 = vadd.f32 %v1363, %v1495
  %v1497 = vpop.f32.mrb[0].mxu0
  %v1498 = vadd.f32 %v1365, %v1497
  %v1499 = vpop.f32.mrb[0].mxu0
  %v1500 = vadd.f32 %v1367, %v1499
  %v1501 = vpop.f32.mrb[0].mxu0
  %v1502 = vadd.f32 %v1369, %v1501
  %1503 = vmatprep.mubr.bf16.mxu0 %v325
  %1504 = vmatmul.mubr.bf16.gmra.mrb[0].mxu0 %v324
  %v1505 = vpop.f32.mrb[0].mxu0
  %v1506 = vadd.f32 %v1373, %v1505
  %v1507 = vpop.f32.mrb[0].mxu0
  %v1508 = vadd.f32 %v1375, %v1507
  %v1509 = vpop.f32.mrb[0].mxu0
  %v1510 = vadd.f32 %v1377, %v1509
  %v1511 = vpop.f32.mrb[0].mxu0
  %v1512 = vadd.f32 %v1379, %v1511
  %1513 = vmatprep.mubr.bf16.mxu0 %v329
  %1514 = vmatmul.mubr.bf16.gmra.mrb[0].mxu0 %v328
  %v1515 = vpop.f32.mrb[0].mxu0
  %v1516 = vadd.f32 %v1383, %v1515
  %v1517 = vpop.f32.mrb[0].mxu0
  %v1518 = vadd.f32 %v1385, %v1517
  %v1519 = vpop.f32.mrb[0].mxu0
  %v1520 = vadd.f32 %v1387, %v1519
  %v1521 = vpop.f32.mrb[0].mxu0
  %v1522 = vadd.f32 %v1389, %v1521
  %1523 = vmatprep.mubr.bf16.mxu0 %v333
  %1524 = vmatmul.mubr.bf16.gmra.mrb[0].mxu0 %v332
  %v1525 = vpop.f32.mrb[0].mxu0
  %v1526 = vadd.f32 %v1393, %v1525
  %v1527 = vpop.f32.mrb[0].mxu0
  %v1528 = vadd.f32 %v1395, %v1527
  %v1529 = vpop.f32.mrb[0].mxu0
  %v1530 = vadd.f32 %v1397, %v1529
  %v1531 = vpop.f32.mrb[0].mxu0
  %v1532 = vadd.f32 %v1399, %v1531
  %1533 = vmatprep.mubr.bf16.mxu0 %v337
  %1534 = vmatmul.mubr.bf16.gmra.mrb[0].mxu0 %v336
  %v1535 = vpop.f32.mrb[0].mxu0
  %v1536 = vadd.f32 %v1403, %v1535
  %v1537 = vpop.f32.mrb[0].mxu0
  %v1538 = vadd.f32 %v1405, %v1537
  %v1539 = vpop.f32.mrb[0].mxu0
  %v1540 = vadd.f32 %v1407, %v1539
  %v1541 = vpop.f32.mrb[0].mxu0
  %v1542 = vadd.f32 %v1409, %v1541
  %1543 = vmatprep.mubr.bf16.mxu0 %v341
  %1544 = vmatmul.mubr.bf16.gmra.mrb[0].mxu0 %v340
  %v1545 = vpop.f32.mrb[0].mxu0
  %v1546 = vadd.f32 %v1413, %v1545
  %v1547 = vpop.f32.mrb[0].mxu0
  %v1548 = vadd.f32 %v1415, %v1547
  %v1549 = vpop.f32.mrb[0].mxu0
  %v1550 = vadd.f32 %v1417, %v1549
  %v1551 = vpop.f32.mrb[0].mxu0
  %v1552 = vadd.f32 %v1419, %v1551
  %1553 = vdwg.mxu0
  %v1554 = vmul.f32 %v1190, %v1190
  %v1555 = vmul.f32 %v1192, %v1192
  %v1556 = vmul.f32 %v1194, %v1194
  %v1557 = vmul.f32 %v1196, %v1196
  %v1558 = vmul.f32 %v1200, %v1200
  %v1559 = vmul.f32 %v1202, %v1202
  %v1560 = vmul.f32 %v1204, %v1204
  %v1561 = vmul.f32 %v1206, %v1206
  %v1562 = vmul.f32 %v1210, %v1210
  %v1563 = vmul.f32 %v1212, %v1212
  %v1564 = vmul.f32 %v1214, %v1214
  %v1565 = vmul.f32 %v1216, %v1216
  %v1566 = vmul.f32 %v1220, %v1220
  %v1567 = vmul.f32 %v1222, %v1222
  %v1568 = vmul.f32 %v1224, %v1224
  %v1569 = vmul.f32 %v1226, %v1226
  %v1570 = vmul.f32 %v1230, %v1230
  %v1571 = vmul.f32 %v1232, %v1232
  %v1572 = vmul.f32 %v1234, %v1234
  %v1573 = vmul.f32 %v1236, %v1236
  %v1574 = vmul.f32 %v1240, %v1240
  %v1575 = vmul.f32 %v1242, %v1242
  %v1576 = vmul.f32 %v1244, %v1244
  %v1577 = vmul.f32 %v1246, %v1246
  %v1578 = vmul.f32 %v1250, %v1250
  %v1579 = vmul.f32 %v1252, %v1252
  %v1580 = vmul.f32 %v1254, %v1254
  %v1581 = vmul.f32 %v1256, %v1256
  %v1582 = vmul.f32 %v1260, %v1260
  %v1583 = vmul.f32 %v1262, %v1262
  %v1584 = vmul.f32 %v1264, %v1264
  %v1585 = vmul.f32 %v1266, %v1266
  %v1586 = vmul.f32 %v1270, %v1270
  %v1587 = vmul.f32 %v1272, %v1272
  %v1588 = vmul.f32 %v1274, %v1274
  %v1589 = vmul.f32 %v1276, %v1276
  %v1590 = vmul.f32 %v1280, %v1280
  %v1591 = vmul.f32 %v1282, %v1282
  %v1592 = vmul.f32 %v1284, %v1284
  %v1593 = vmul.f32 %v1286, %v1286
  %v1594 = vmul.f32 %v1456, %v1456
  %v1595 = vmul.f32 %v1458, %v1458
  %v1596 = vmul.f32 %v1460, %v1460
  %v1597 = vmul.f32 %v1462, %v1462
  %v1598 = vmul.f32 %v1466, %v1466
  %v1599 = vmul.f32 %v1468, %v1468
  %v1600 = vmul.f32 %v1470, %v1470
  %v1601 = vmul.f32 %v1472, %v1472
  %v1602 = vmul.f32 %v1476, %v1476
  %v1603 = vmul.f32 %v1478, %v1478
  %v1604 = vmul.f32 %v1480, %v1480
  %v1605 = vmul.f32 %v1482, %v1482
  %v1606 = vmul.f32 %v1486, %v1486
  %v1607 = vmul.f32 %v1488, %v1488
  %v1608 = vmul.f32 %v1490, %v1490
  %v1609 = vmul.f32 %v1492, %v1492
  %v1610 = vmul.f32 %v1496, %v1496
  %v1611 = vmul.f32 %v1498, %v1498
  %v1612 = vmul.f32 %v1500, %v1500
  %v1613 = vmul.f32 %v1502, %v1502
  %v1614 = vmul.f32 %v1506, %v1506
  %v1615 = vmul.f32 %v1508, %v1508
  %v1616 = vmul.f32 %v1510, %v1510
  %v1617 = vmul.f32 %v1512, %v1512
  %v1618 = vmul.f32 %v1516, %v1516
  %v1619 = vmul.f32 %v1518, %v1518
  %v1620 = vmul.f32 %v1520, %v1520
  %v1621 = vmul.f32 %v1522, %v1522
  %v1622 = vmul.f32 %v1526, %v1526
  %v1623 = vmul.f32 %v1528, %v1528
  %v1624 = vmul.f32 %v1530, %v1530
  %v1625 = vmul.f32 %v1532, %v1532
  %v1626 = vmul.f32 %v1536, %v1536
  %v1627 = vmul.f32 %v1538, %v1538
  %v1628 = vmul.f32 %v1540, %v1540
  %v1629 = vmul.f32 %v1542, %v1542
  %v1630 = vmul.f32 %v1546, %v1546
  %v1631 = vmul.f32 %v1548, %v1548
  %v1632 = vmul.f32 %v1550, %v1550
  %v1633 = vmul.f32 %v1552, %v1552
  %v1634 = vadd.f32 %v1554, %v1594
  %v1635 = vadd.f32 %v1555, %v1595
  %v1636 = vadd.f32 %v1556, %v1596
  %v1637 = vadd.f32 %v1557, %v1597
  %v1638 = vadd.f32 %v1558, %v1598
  %v1639 = vadd.f32 %v1559, %v1599
  %v1640 = vadd.f32 %v1560, %v1600
  %v1641 = vadd.f32 %v1561, %v1601
  %v1642 = vadd.f32 %v1562, %v1602
  %v1643 = vadd.f32 %v1563, %v1603
  %v1644 = vadd.f32 %v1564, %v1604
  %v1645 = vadd.f32 %v1565, %v1605
  %v1646 = vadd.f32 %v1566, %v1606
  %v1647 = vadd.f32 %v1567, %v1607
  %v1648 = vadd.f32 %v1568, %v1608
  %v1649 = vadd.f32 %v1569, %v1609
  %v1650 = vadd.f32 %v1570, %v1610
  %v1651 = vadd.f32 %v1571, %v1611
  %v1652 = vadd.f32 %v1572, %v1612
  %v1653 = vadd.f32 %v1573, %v1613
  %v1654 = vadd.f32 %v1574, %v1614
  %v1655 = vadd.f32 %v1575, %v1615
  %v1656 = vadd.f32 %v1576, %v1616
  %v1657 = vadd.f32 %v1577, %v1617
  %v1658 = vadd.f32 %v1578, %v1618
  %v1659 = vadd.f32 %v1579, %v1619
  %v1660 = vadd.f32 %v1580, %v1620
  %v1661 = vadd.f32 %v1581, %v1621
  %v1662 = vadd.f32 %v1582, %v1622
  %v1663 = vadd.f32 %v1583, %v1623
  %v1664 = vadd.f32 %v1584, %v1624
  %v1665 = vadd.f32 %v1585, %v1625
  %v1666 = vadd.f32 %v1586, %v1626
  %v1667 = vadd.f32 %v1587, %v1627
  %v1668 = vadd.f32 %v1588, %v1628
  %v1669 = vadd.f32 %v1589, %v1629
  %v1670 = vadd.f32 %v1590, %v1630
  %v1671 = vadd.f32 %v1591, %v1631
  %v1672 = vadd.f32 %v1592, %v1632
  %v1673 = vadd.f32 %v1593, %v1633
  %v1674 = vld [vmem:[%s2] sm:$0xff]
  %v1675 = vld [vmem:[%s2 + $0x8] sm:$0xff]
  %v1676 = vld [vmem:[%s2 + $0x10] sm:$0xff]
  %v1677 = vld [vmem:[%s2 + $0x18] sm:$0xff]
  %v1678 = vld [vmem:[%s2 + $0x20] sm:$0xff]
  %v1679 = vld [vmem:[%s2 + $0x28] sm:$0xff]
  %v1680 = vld [vmem:[%s2 + $0x30] sm:$0xff]
  %v1681 = vld [vmem:[%s2 + $0x38] sm:$0xff]
  %v1682 = vld [vmem:[%s2 + $0x40] sm:$0xff]
  %v1683 = vld [vmem:[%s2 + $0x48] sm:$0xff]
  %v1684 = vld [vmem:[%s2 + $0x50] sm:$0xff]
  %v1685 = vld [vmem:[%s2 + $0x58] sm:$0xff]
  %v1686 = vld [vmem:[%s2 + $0x60] sm:$0xff]
  %v1687 = vld [vmem:[%s2 + $0x68] sm:$0xff]
  %v1688 = vld [vmem:[%s2 + $0x70] sm:$0xff]
  %v1689 = vld [vmem:[%s2 + $0x78] sm:$0xff]
  %v1690 = vld [vmem:[%s2 + $0x80] sm:$0xff]
  %v1691 = vld [vmem:[%s2 + $0x88] sm:$0xff]
  %v1692 = vld [vmem:[%s2 + $0x90] sm:$0xff]
  %v1693 = vld [vmem:[%s2 + $0x98] sm:$0xff]
  %v1694 = vld [vmem:[%s2 + $0xa0] sm:$0xff]
  %v1695 = vld [vmem:[%s2 + $0xa8] sm:$0xff]
  %v1696 = vld [vmem:[%s2 + $0xb0] sm:$0xff]
  %v1697 = vld [vmem:[%s2 + $0xb8] sm:$0xff]
  %v1698 = vld [vmem:[%s2 + $0xc0] sm:$0xff]
  %v1699 = vld [vmem:[%s2 + $0xc8] sm:$0xff]
  %v1700 = vld [vmem:[%s2 + $0xd0] sm:$0xff]
  %v1701 = vld [vmem:[%s2 + $0xd8] sm:$0xff]
  %v1702 = vld [vmem:[%s2 + $0xe0] sm:$0xff]
  %v1703 = vld [vmem:[%s2 + $0xe8] sm:$0xff]
  %v1704 = vld [vmem:[%s2 + $0xf0] sm:$0xff]
  %v1705 = vld [vmem:[%s2 + $0xf8] sm:$0xff]
  %1706 = vmatprep.subr.mxu0 0.0
  %1707 = vmatpush1.msra.mxu0 %v1674
  %1708 = vmatprep.subr.mxu0 0.0
  %1709 = vmatpush1.msra.mxu0 %v1675
  %1710 = vmatprep.subr.mxu0 0.0
  %1711 = vmatpush1.msra.mxu0 %v1676
  %1712 = vmatprep.subr.mxu0 0.0
  %1713 = vmatpush1.msra.mxu0 %v1677
  %1714 = vmatprep.subr.mxu0 0.0
  %1715 = vmatpush1.msra.mxu0 %v1678
  %1716 = vmatprep.subr.mxu0 0.0
  %1717 = vmatpush1.msra.mxu0 %v1679
  %1718 = vmatprep.subr.mxu0 0.0
  %1719 = vmatpush1.msra.mxu0 %v1680
  %1720 = vmatprep.subr.mxu0 0.0
  %1721 = vmatpush1.msra.mxu0 %v1681
  %1722 = vmatprep.subr.mxu0 0.0
  %1723 = vmatpush1.msra.mxu0 %v1682
  %1724 = vmatprep.subr.mxu0 0.0
  %1725 = vmatpush1.msra.mxu0 %v1683
  %1726 = vmatprep.subr.mxu0 0.0
  %1727 = vmatpush1.msra.mxu0 %v1684
  %1728 = vmatprep.subr.mxu0 0.0
  %1729 = vmatpush1.msra.mxu0 %v1685
  %1730 = vmatprep.subr.mxu0 0.0
  %1731 = vmatpush1.msra.mxu0 %v1686
  %1732 = vmatprep.subr.mxu0 0.0
  %1733 = vmatpush1.msra.mxu0 %v1687
  %1734 = vmatprep.subr.mxu0 0.0
  %1735 = vmatpush1.msra.mxu0 %v1688
  %1736 = vmatprep.subr.mxu0 0.0
  %1737 = vmatpush1.msra.mxu0 %v1689
  %1738 = vmatprep.subr.mxu0 0.0
  %1739 = vmatpush1.msra.mxu0 %v1690
  %1740 = vmatprep.subr.mxu0 0.0
  %1741 = vmatpush1.msra.mxu0 %v1691
  %1742 = vmatprep.subr.mxu0 0.0
  %1743 = vmatpush1.msra.mxu0 %v1692
  %1744 = vmatprep.subr.mxu0 0.0
  %1745 = vmatpush1.msra.mxu0 %v1693
  %1746 = vmatprep.subr.mxu0 0.0
  %1747 = vmatpush1.msra.mxu0 %v1694
  %1748 = vmatprep.subr.mxu0 0.0
  %1749 = vmatpush1.msra.mxu0 %v1695
  %1750 = vmatprep.subr.mxu0 0.0
  %1751 = vmatpush1.msra.mxu0 %v1696
  %1752 = vmatprep.subr.mxu0 0.0
  %1753 = vmatpush1.msra.mxu0 %v1697
  %1754 = vmatprep.subr.mxu0 0.0
  %1755 = vmatpush1.msra.mxu0 %v1698
  %1756 = vmatprep.subr.mxu0 0.0
  %1757 = vmatpush1.msra.mxu0 %v1699
  %1758 = vmatprep.subr.mxu0 0.0
  %1759 = vmatpush1.msra.mxu0 %v1700
  %1760 = vmatprep.subr.mxu0 0.0
  %1761 = vmatpush1.msra.mxu0 %v1701
  %1762 = vmatprep.subr.mxu0 0.0
  %1763 = vmatpush1.msra.mxu0 %v1702
  %1764 = vmatprep.subr.mxu0 0.0
  %1765 = vmatpush1.msra.mxu0 %v1703
  %1766 = vmatprep.subr.mxu0 0.0
  %1767 = vmatpush1.msra.mxu0 %v1704
  %1768 = vmatprep.subr.mxu0 0.0
  %1769 = vmatpush1.msra.mxu0 %v1705
  %1770 = vmatprep.mubr.f32.mxu0 %v1635
  %1771 = vmatmul.mubr.f32.gmra.mrb[0].mxu0 %v1634
  %v1772 = vpop.f32.mrb[0].mxu0
  %v1773 = vadd.f32 0.0, %v1772
  %v1774 = vpop.f32.mrb[0].mxu0
  %1775 = vmatprep.mubr.f32.mxu0 %v1637
  %1776 = vmatmul.mubr.f32.gmra.mrb[0].mxu0 %v1636
  %v1777 = vpop.f32.mrb[0].mxu0
  %v1778 = vadd.f32 0.0, %v1777
  %v1779 = vpop.f32.mrb[0].mxu0
  %1780 = vmatprep.mubr.f32.mxu0 %v1639
  %1781 = vmatmul.mubr.f32.gmra.mrb[0].mxu0 %v1638
  %v1782 = vpop.f32.mrb[0].mxu0
  %v1783 = vadd.f32 0.0, %v1782
  %v1784 = vpop.f32.mrb[0].mxu0
  %1785 = vmatprep.mubr.f32.mxu0 %v1641
  %1786 = vmatmul.mubr.f32.gmra.mrb[0].mxu0 %v1640
  %v1787 = vpop.f32.mrb[0].mxu0
  %v1788 = vadd.f32 0.0, %v1787
  %v1789 = vpop.f32.mrb[0].mxu0
  %1790 = vmatprep.mubr.f32.mxu0 %v1643
  %1791 = vmatmul.mubr.f32.gmra.mrb[0].mxu0 %v1642
  %v1792 = vpop.f32.mrb[0].mxu0
  %v1793 = vadd.f32 0.0, %v1792
  %v1794 = vpop.f32.mrb[0].mxu0
  %1795 = vmatprep.mubr.f32.mxu0 %v1645
  %1796 = vmatmul.mubr.f32.gmra.mrb[0].mxu0 %v1644
  %v1797 = vpop.f32.mrb[0].mxu0
  %v1798 = vadd.f32 0.0, %v1797
  %v1799 = vpop.f32.mrb[0].mxu0
  %1800 = vmatprep.mubr.f32.mxu0 %v1647
  %1801 = vmatmul.mubr.f32.gmra.mrb[0].mxu0 %v1646
  %v1802 = vpop.f32.mrb[0].mxu0
  %v1803 = vadd.f32 0.0, %v1802
  %v1804 = vpop.f32.mrb[0].mxu0
  %1805 = vmatprep.mubr.f32.mxu0 %v1649
  %1806 = vmatmul.mubr.f32.gmra.mrb[0].mxu0 %v1648
  %v1807 = vpop.f32.mrb[0].mxu0
  %v1808 = vadd.f32 0.0, %v1807
  %v1809 = vpop.f32.mrb[0].mxu0
  %1810 = vmatprep.mubr.f32.mxu0 %v1651
  %1811 = vmatmul.mubr.f32.gmra.mrb[0].mxu0 %v1650
  %v1812 = vpop.f32.mrb[0].mxu0
  %v1813 = vadd.f32 0.0, %v1812
  %v1814 = vpop.f32.mrb[0].mxu0
  %1815 = vmatprep.mubr.f32.mxu0 %v1653
  %1816 = vmatmul.mubr.f32.gmra.mrb[0].mxu0 %v1652
  %v1817 = vpop.f32.mrb[0].mxu0
  %v1818 = vadd.f32 0.0, %v1817
  %v1819 = vpop.f32.mrb[0].mxu0
  %1820 = vmatprep.mubr.f32.mxu0 %v1655
  %1821 = vmatmul.mubr.f32.gmra.mrb[0].mxu0 %v1654
  %v1822 = vpop.f32.mrb[0].mxu0
  %v1823 = vadd.f32 0.0, %v1822
  %v1824 = vpop.f32.mrb[0].mxu0
  %1825 = vmatprep.mubr.f32.mxu0 %v1657
  %1826 = vmatmul.mubr.f32.gmra.mrb[0].mxu0 %v1656
  %v1827 = vpop.f32.mrb[0].mxu0
  %v1828 = vadd.f32 0.0, %v1827
  %v1829 = vpop.f32.mrb[0].mxu0
  %1830 = vmatprep.mubr.f32.mxu0 %v1659
  %1831 = vmatmul.mubr.f32.gmra.mrb[0].mxu0 %v1658
  %v1832 = vpop.f32.mrb[0].mxu0
  %v1833 = vadd.f32 0.0, %v1832
  %v1834 = vpop.f32.mrb[0].mxu0
  %1835 = vmatprep.mubr.f32.mxu0 %v1661
  %1836 = vmatmul.mubr.f32.gmra.mrb[0].mxu0 %v1660
  %v1837 = vpop.f32.mrb[0].mxu0
  %v1838 = vadd.f32 0.0, %v1837
  %v1839 = vpop.f32.mrb[0].mxu0
  %1840 = vmatprep.mubr.f32.mxu0 %v1663
  %1841 = vmatmul.mubr.f32.gmra.mrb[0].mxu0 %v1662
  %v1842 = vpop.f32.mrb[0].mxu0
  %v1843 = vadd.f32 0.0, %v1842
  %v1844 = vpop.f32.mrb[0].mxu0
  %1845 = vmatprep.mubr.f32.mxu0 %v1665
  %1846 = vmatmul.mubr.f32.gmra.mrb[0].mxu0 %v1664
  %v1847 = vpop.f32.mrb[0].mxu0
  %v1848 = vadd.f32 0.0, %v1847
  %v1849 = vpop.f32.mrb[0].mxu0
  %1850 = vmatprep.mubr.f32.mxu0 %v1667
  %1851 = vmatmul.mubr.f32.gmra.mrb[0].mxu0 %v1666
  %v1852 = vpop.f32.mrb[0].mxu0
  %v1853 = vadd.f32 0.0, %v1852
  %v1854 = vpop.f32.mrb[0].mxu0
  %1855 = vmatprep.mubr.f32.mxu0 %v1669
  %1856 = vmatmul.mubr.f32.gmra.mrb[0].mxu0 %v1668
  %v1857 = vpop.f32.mrb[0].mxu0
  %v1858 = vadd.f32 0.0, %v1857
  %v1859 = vpop.f32.mrb[0].mxu0
  %1860 = vmatprep.mubr.f32.mxu0 %v1671
  %1861 = vmatmul.mubr.f32.gmra.mrb[0].mxu0 %v1670
  %v1862 = vpop.f32.mrb[0].mxu0
  %v1863 = vadd.f32 0.0, %v1862
  %v1864 = vpop.f32.mrb[0].mxu0
  %1865 = vmatprep.mubr.f32.mxu0 %v1673
  %1866 = vmatmul.mubr.f32.gmra.mrb[0].mxu0 %v1672
  %v1867 = vpop.f32.mrb[0].mxu0
  %v1868 = vadd.f32 0.0, %v1867
  %v1869 = vpop.f32.mrb[0].mxu0
  %1870 = vdwg.mxu0
  %vm1879 = vcmask 1046528
  %v1880 = vrot.slane %v1773, 1
  %v1881 = vrot.slane %v1778, 1
  %v1882 = vsel %vm1879, %v1880, %v1881
  %v1883 = vrot.slane %v1798, 1
  %v1884 = vrot.slane %v1803, 1
  %v1885 = vsel %vm1879, %v1883, %v1884
  %v1886 = vrot.slane %v1823, 1
  %v1887 = vrot.slane %v1828, 1
  %v1888 = vsel %vm1879, %v1886, %v1887
  %v1889 = vrot.slane %v1848, 1
  %v1890 = vrot.slane %v1853, 1
  %v1891 = vsel %vm1879, %v1889, %v1890
  %v1900 = vadd.f32 %v1773, %v1882
  %v1901 = vadd.f32 %v1778, %v1881
  %v1902 = vadd.f32 %v1798, %v1885
  %v1903 = vadd.f32 %v1803, %v1884
  %v1904 = vadd.f32 %v1823, %v1888
  %v1905 = vadd.f32 %v1828, %v1887
  %v1906 = vadd.f32 %v1848, %v1891
  %v1907 = vadd.f32 %v1853, %v1890
  %vm1908 = vcmask 1045504
  %v1909 = vrot.slane %v1773, 2
  %v1910 = vrot.slane %v1778, 2
  %v1911 = vsel %vm1908, %v1909, %v1910
  %v1912 = vrot.slane %v1798, 2
  %v1913 = vrot.slane %v1803, 2
  %v1914 = vsel %vm1908, %v1912, %v1913
  %v1915 = vrot.slane %v1823, 2
  %v1916 = vrot.slane %v1828, 2
  %v1917 = vsel %vm1908, %v1915, %v1916
  %v1918 = vrot.slane %v1848, 2
  %v1919 = vrot.slane %v1853, 2
  %v1920 = vsel %vm1908, %v1918, %v1919
  %v1929 = vadd.f32 %v1900, %v1911
  %v1930 = vadd.f32 %v1901, %v1910
  %v1931 = vadd.f32 %v1902, %v1914
  %v1932 = vadd.f32 %v1903, %v1913
  %v1933 = vadd.f32 %v1904, %v1917
  %v1934 = vadd.f32 %v1905, %v1916
  %v1935 = vadd.f32 %v1906, %v1920
  %v1936 = vadd.f32 %v1907, %v1919
  %vm1937 = vcmask 1044480
  %v1938 = vrot.slane %v1773, 3
  %v1939 = vrot.slane %v1778, 3
  %v1940 = vsel %vm1937, %v1938, %v1939
  %v1941 = vrot.slane %v1798, 3
  %v1942 = vrot.slane %v1803, 3
  %v1943 = vsel %vm1937, %v1941, %v1942
  %v1944 = vrot.slane %v1823, 3
  %v1945 = vrot.slane %v1828, 3
  %v1946 = vsel %vm1937, %v1944, %v1945
  %v1947 = vrot.slane %v1848, 3
  %v1948 = vrot.slane %v1853, 3
  %v1949 = vsel %vm1937, %v1947, %v1948
  %v1958 = vadd.f32 %v1929, %v1940
  %v1959 = vadd.f32 %v1930, %v1939
  %v1960 = vadd.f32 %v1931, %v1943
  %v1961 = vadd.f32 %v1932, %v1942
  %v1962 = vadd.f32 %v1933, %v1946
  %v1963 = vadd.f32 %v1934, %v1945
  %v1964 = vadd.f32 %v1935, %v1949
  %v1965 = vadd.f32 %v1936, %v1948
  %vm1966 = vcmask 1043456
  %v1967 = vrot.slane %v1773, 4
  %v1968 = vrot.slane %v1778, 4
  %v1969 = vsel %vm1966, %v1967, %v1968
  %v1970 = vrot.slane %v1798, 4
  %v1971 = vrot.slane %v1803, 4
  %v1972 = vsel %vm1966, %v1970, %v1971
  %v1973 = vrot.slane %v1823, 4
  %v1974 = vrot.slane %v1828, 4
  %v1975 = vsel %vm1966, %v1973, %v1974
  %v1976 = vrot.slane %v1848, 4
  %v1977 = vrot.slane %v1853, 4
  %v1978 = vsel %vm1966, %v1976, %v1977
  %v1987 = vadd.f32 %v1958, %v1969
  %v1988 = vadd.f32 %v1959, %v1968
  %v1989 = vadd.f32 %v1960, %v1972
  %v1990 = vadd.f32 %v1961, %v1971
  %v1991 = vadd.f32 %v1962, %v1975
  %v1992 = vadd.f32 %v1963, %v1974
  %v1993 = vadd.f32 %v1964, %v1978
  %v1994 = vadd.f32 %v1965, %v1977
  %vm1995 = vcmask 1042432
  %v1996 = vrot.slane %v1773, 5
  %v1997 = vrot.slane %v1778, 5
  %v1998 = vsel %vm1995, %v1996, %v1997
  %v1999 = vrot.slane %v1798, 5
  %v2000 = vrot.slane %v1803, 5
  %v2001 = vsel %vm1995, %v1999, %v2000
  %v2002 = vrot.slane %v1823, 5
  %v2003 = vrot.slane %v1828, 5
  %v2004 = vsel %vm1995, %v2002, %v2003
  %v2005 = vrot.slane %v1848, 5
  %v2006 = vrot.slane %v1853, 5
  %v2007 = vsel %vm1995, %v2005, %v2006
  %v2016 = vadd.f32 %v1987, %v1998
  %v2017 = vadd.f32 %v1988, %v1997
  %v2018 = vadd.f32 %v1989, %v2001
  %v2019 = vadd.f32 %v1990, %v2000
  %v2020 = vadd.f32 %v1991, %v2004
  %v2021 = vadd.f32 %v1992, %v2003
  %v2022 = vadd.f32 %v1993, %v2007
  %v2023 = vadd.f32 %v1994, %v2006
  %vm2024 = vcmask 1041408
  %v2025 = vrot.slane %v1773, 6
  %v2026 = vrot.slane %v1778, 6
  %v2027 = vsel %vm2024, %v2025, %v2026
  %v2028 = vrot.slane %v1798, 6
  %v2029 = vrot.slane %v1803, 6
  %v2030 = vsel %vm2024, %v2028, %v2029
  %v2031 = vrot.slane %v1823, 6
  %v2032 = vrot.slane %v1828, 6
  %v2033 = vsel %vm2024, %v2031, %v2032
  %v2034 = vrot.slane %v1848, 6
  %v2035 = vrot.slane %v1853, 6
  %v2036 = vsel %vm2024, %v2034, %v2035
  %v2045 = vadd.f32 %v2016, %v2027
  %v2046 = vadd.f32 %v2017, %v2026
  %v2047 = vadd.f32 %v2018, %v2030
  %v2048 = vadd.f32 %v2019, %v2029
  %v2049 = vadd.f32 %v2020, %v2033
  %v2050 = vadd.f32 %v2021, %v2032
  %v2051 = vadd.f32 %v2022, %v2036
  %v2052 = vadd.f32 %v2023, %v2035
  %vm2053 = vcmask 1040384
  %v2054 = vrot.slane %v1773, 7
  %v2055 = vrot.slane %v1778, 7
  %v2056 = vsel %vm2053, %v2054, %v2055
  %v2057 = vrot.slane %v1798, 7
  %v2058 = vrot.slane %v1803, 7
  %v2059 = vsel %vm2053, %v2057, %v2058
  %v2060 = vrot.slane %v1823, 7
  %v2061 = vrot.slane %v1828, 7
  %v2062 = vsel %vm2053, %v2060, %v2061
  %v2063 = vrot.slane %v1848, 7
  %v2064 = vrot.slane %v1853, 7
  %v2065 = vsel %vm2053, %v2063, %v2064
  %v2074 = vadd.f32 %v2045, %v2056
  %v2075 = vadd.f32 %v2046, %v2055
  %v2076 = vadd.f32 %v2047, %v2059
  %v2077 = vadd.f32 %v2048, %v2058
  %v2078 = vadd.f32 %v2049, %v2062
  %v2079 = vadd.f32 %v2050, %v2061
  %v2080 = vadd.f32 %v2051, %v2065
  %v2081 = vadd.f32 %v2052, %v2064
  %v2082 = vadd.f32 %v2074, %v1778
  %v2083 = vadd.f32 %v2075, %v1783
  %v2084 = vadd.f32 %v2076, %v1803
  %v2085 = vadd.f32 %v2077, %v1808
  %v2086 = vadd.f32 %v2078, %v1828
  %v2087 = vadd.f32 %v2079, %v1833
  %v2088 = vadd.f32 %v2080, %v1853
  %v2089 = vadd.f32 %v2081, %v1858
  %v2094 = vrot.slane %v1783, 1
  %v2095 = vsel %vm1879, %v1881, %v2094
  %v2096 = vrot.slane %v1808, 1
  %v2097 = vsel %vm1879, %v1884, %v2096
  %v2098 = vrot.slane %v1833, 1
  %v2099 = vsel %vm1879, %v1887, %v2098
  %v2100 = vrot.slane %v1858, 1
  %v2101 = vsel %vm1879, %v1890, %v2100
  %v2110 = vadd.f32 %v2082, %v2095
  %v2111 = vadd.f32 %v2083, %v2094
  %v2112 = vadd.f32 %v2084, %v2097
  %v2113 = vadd.f32 %v2085, %v2096
  %v2114 = vadd.f32 %v2086, %v2099
  %v2115 = vadd.f32 %v2087, %v2098
  %v2116 = vadd.f32 %v2088, %v2101
  %v2117 = vadd.f32 %v2089, %v2100
  %v2118 = vrot.slane %v1783, 2
  %v2119 = vsel %vm1908, %v1910, %v2118
  %v2120 = vrot.slane %v1808, 2
  %v2121 = vsel %vm1908, %v1913, %v2120
  %v2122 = vrot.slane %v1833, 2
  %v2123 = vsel %vm1908, %v1916, %v2122
  %v2124 = vrot.slane %v1858, 2
  %v2125 = vsel %vm1908, %v1919, %v2124
  %v2134 = vadd.f32 %v2110, %v2119
  %v2135 = vadd.f32 %v2111, %v2118
  %v2136 = vadd.f32 %v2112, %v2121
  %v2137 = vadd.f32 %v2113, %v2120
  %v2138 = vadd.f32 %v2114, %v2123
  %v2139 = vadd.f32 %v2115, %v2122
  %v2140 = vadd.f32 %v2116, %v2125
  %v2141 = vadd.f32 %v2117, %v2124
  %v2142 = vrot.slane %v1783, 3
  %v2143 = vsel %vm1937, %v1939, %v2142
  %v2144 = vrot.slane %v1808, 3
  %v2145 = vsel %vm1937, %v1942, %v2144
  %v2146 = vrot.slane %v1833, 3
  %v2147 = vsel %vm1937, %v1945, %v2146
  %v2148 = vrot.slane %v1858, 3
  %v2149 = vsel %vm1937, %v1948, %v2148
  %v2158 = vadd.f32 %v2134, %v2143
  %v2159 = vadd.f32 %v2135, %v2142
  %v2160 = vadd.f32 %v2136, %v2145
  %v2161 = vadd.f32 %v2137, %v2144
  %v2162 = vadd.f32 %v2138, %v2147
  %v2163 = vadd.f32 %v2139, %v2146
  %v2164 = vadd.f32 %v2140, %v2149
  %v2165 = vadd.f32 %v2141, %v2148
  %v2166 = vrot.slane %v1783, 4
  %v2167 = vsel %vm1966, %v1968, %v2166
  %v2168 = vrot.slane %v1808, 4
  %v2169 = vsel %vm1966, %v1971, %v2168
  %v2170 = vrot.slane %v1833, 4
  %v2171 = vsel %vm1966, %v1974, %v2170
  %v2172 = vrot.slane %v1858, 4
  %v2173 = vsel %vm1966, %v1977, %v2172
  %v2182 = vadd.f32 %v2158, %v2167
  %v2183 = vadd.f32 %v2159, %v2166
  %v2184 = vadd.f32 %v2160, %v2169
  %v2185 = vadd.f32 %v2161, %v2168
  %v2186 = vadd.f32 %v2162, %v2171
  %v2187 = vadd.f32 %v2163, %v2170
  %v2188 = vadd.f32 %v2164, %v2173
  %v2189 = vadd.f32 %v2165, %v2172
  %v2190 = vrot.slane %v1783, 5
  %v2191 = vsel %vm1995, %v1997, %v2190
  %v2192 = vrot.slane %v1808, 5
  %v2193 = vsel %vm1995, %v2000, %v2192
  %v2194 = vrot.slane %v1833, 5
  %v2195 = vsel %vm1995, %v2003, %v2194
  %v2196 = vrot.slane %v1858, 5
  %v2197 = vsel %vm1995, %v2006, %v2196
  %v2206 = vadd.f32 %v2182, %v2191
  %v2207 = vadd.f32 %v2183, %v2190
  %v2208 = vadd.f32 %v2184, %v2193
  %v2209 = vadd.f32 %v2185, %v2192
  %v2210 = vadd.f32 %v2186, %v2195
  %v2211 = vadd.f32 %v2187, %v2194
  %v2212 = vadd.f32 %v2188, %v2197
  %v2213 = vadd.f32 %v2189, %v2196
  %v2214 = vrot.slane %v1783, 6
  %v2215 = vsel %vm2024, %v2026, %v2214
  %v2216 = vrot.slane %v1808, 6
  %v2217 = vsel %vm2024, %v2029, %v2216
  %v2218 = vrot.slane %v1833, 6
  %v2219 = vsel %vm2024, %v2032, %v2218
  %v2220 = vrot.slane %v1858, 6
  %v2221 = vsel %vm2024, %v2035, %v2220
  %v2230 = vadd.f32 %v2206, %v2215
  %v2231 = vadd.f32 %v2207, %v2214
  %v2232 = vadd.f32 %v2208, %v2217
  %v2233 = vadd.f32 %v2209, %v2216
  %v2234 = vadd.f32 %v2210, %v2219
  %v2235 = vadd.f32 %v2211, %v2218
  %v2236 = vadd.f32 %v2212, %v2221
  %v2237 = vadd.f32 %v2213, %v2220
  %v2238 = vrot.slane %v1783, 7
  %v2239 = vsel %vm2053, %v2055, %v2238
  %v2240 = vrot.slane %v1808, 7
  %v2241 = vsel %vm2053, %v2058, %v2240
  %v2242 = vrot.slane %v1833, 7
  %v2243 = vsel %vm2053, %v2061, %v2242
  %v2244 = vrot.slane %v1858, 7
  %v2245 = vsel %vm2053, %v2064, %v2244
  %v2254 = vadd.f32 %v2230, %v2239
  %v2255 = vadd.f32 %v2231, %v2238
  %v2256 = vadd.f32 %v2232, %v2241
  %v2257 = vadd.f32 %v2233, %v2240
  %v2258 = vadd.f32 %v2234, %v2243
  %v2259 = vadd.f32 %v2235, %v2242
  %v2260 = vadd.f32 %v2236, %v2245
  %v2261 = vadd.f32 %v2237, %v2244
  %v2262 = vadd.f32 %v2254, %v1783
  %v2263 = vadd.f32 %v2255, %v1788
  %v2264 = vadd.f32 %v2256, %v1808
  %v2265 = vadd.f32 %v2257, %v1813
  %v2266 = vadd.f32 %v2258, %v1833
  %v2267 = vadd.f32 %v2259, %v1838
  %v2268 = vadd.f32 %v2260, %v1858
  %v2269 = vadd.f32 %v2261, %v1863
  %v2274 = vrot.slane %v1788, 1
  %v2275 = vsel %vm1879, %v2094, %v2274
  %v2276 = vrot.slane %v1813, 1
  %v2277 = vsel %vm1879, %v2096, %v2276
  %v2278 = vrot.slane %v1838, 1
  %v2279 = vsel %vm1879, %v2098, %v2278
  %v2280 = vrot.slane %v1863, 1
  %v2281 = vsel %vm1879, %v2100, %v2280
  %v2290 = vadd.f32 %v2262, %v2275
  %v2291 = vadd.f32 %v2263, %v2274
  %v2292 = vadd.f32 %v2264, %v2277
  %v2293 = vadd.f32 %v2265, %v2276
  %v2294 = vadd.f32 %v2266, %v2279
  %v2295 = vadd.f32 %v2267, %v2278
  %v2296 = vadd.f32 %v2268, %v2281
  %v2297 = vadd.f32 %v2269, %v2280
  %v2298 = vrot.slane %v1788, 2
  %v2299 = vsel %vm1908, %v2118, %v2298
  %v2300 = vrot.slane %v1813, 2
  %v2301 = vsel %vm1908, %v2120, %v2300
  %v2302 = vrot.slane %v1838, 2
  %v2303 = vsel %vm1908, %v2122, %v2302
  %v2304 = vrot.slane %v1863, 2
  %v2305 = vsel %vm1908, %v2124, %v2304
  %v2314 = vadd.f32 %v2290, %v2299
  %v2315 = vadd.f32 %v2291, %v2298
  %v2316 = vadd.f32 %v2292, %v2301
  %v2317 = vadd.f32 %v2293, %v2300
  %v2318 = vadd.f32 %v2294, %v2303
  %v2319 = vadd.f32 %v2295, %v2302
  %v2320 = vadd.f32 %v2296, %v2305
  %v2321 = vadd.f32 %v2297, %v2304
  %v2322 = vrot.slane %v1788, 3
  %v2323 = vsel %vm1937, %v2142, %v2322
  %v2324 = vrot.slane %v1813, 3
  %v2325 = vsel %vm1937, %v2144, %v2324
  %v2326 = vrot.slane %v1838, 3
  %v2327 = vsel %vm1937, %v2146, %v2326
  %v2328 = vrot.slane %v1863, 3
  %v2329 = vsel %vm1937, %v2148, %v2328
  %v2338 = vadd.f32 %v2314, %v2323
  %v2339 = vadd.f32 %v2315, %v2322
  %v2340 = vadd.f32 %v2316, %v2325
  %v2341 = vadd.f32 %v2317, %v2324
  %v2342 = vadd.f32 %v2318, %v2327
  %v2343 = vadd.f32 %v2319, %v2326
  %v2344 = vadd.f32 %v2320, %v2329
  %v2345 = vadd.f32 %v2321, %v2328
  %v2346 = vrot.slane %v1788, 4
  %v2347 = vsel %vm1966, %v2166, %v2346
  %v2348 = vrot.slane %v1813, 4
  %v2349 = vsel %vm1966, %v2168, %v2348
  %v2350 = vrot.slane %v1838, 4
  %v2351 = vsel %vm1966, %v2170, %v2350
  %v2352 = vrot.slane %v1863, 4
  %v2353 = vsel %vm1966, %v2172, %v2352
  %v2362 = vadd.f32 %v2338, %v2347
  %v2363 = vadd.f32 %v2339, %v2346
  %v2364 = vadd.f32 %v2340, %v2349
  %v2365 = vadd.f32 %v2341, %v2348
  %v2366 = vadd.f32 %v2342, %v2351
  %v2367 = vadd.f32 %v2343, %v2350
  %v2368 = vadd.f32 %v2344, %v2353
  %v2369 = vadd.f32 %v2345, %v2352
  %v2370 = vrot.slane %v1788, 5
  %v2371 = vsel %vm1995, %v2190, %v2370
  %v2372 = vrot.slane %v1813, 5
  %v2373 = vsel %vm1995, %v2192, %v2372
  %v2374 = vrot.slane %v1838, 5
  %v2375 = vsel %vm1995, %v2194, %v2374
  %v2376 = vrot.slane %v1863, 5
  %v2377 = vsel %vm1995, %v2196, %v2376
  %v2386 = vadd.f32 %v2362, %v2371
  %v2387 = vadd.f32 %v2363, %v2370
  %v2388 = vadd.f32 %v2364, %v2373
  %v2389 = vadd.f32 %v2365, %v2372
  %v2390 = vadd.f32 %v2366, %v2375
  %v2391 = vadd.f32 %v2367, %v2374
  %v2392 = vadd.f32 %v2368, %v2377
  %v2393 = vadd.f32 %v2369, %v2376
  %v2394 = vrot.slane %v1788, 6
  %v2395 = vsel %vm2024, %v2214, %v2394
  %v2396 = vrot.slane %v1813, 6
  %v2397 = vsel %vm2024, %v2216, %v2396
  %v2398 = vrot.slane %v1838, 6
  %v2399 = vsel %vm2024, %v2218, %v2398
  %v2400 = vrot.slane %v1863, 6
  %v2401 = vsel %vm2024, %v2220, %v2400
  %v2410 = vadd.f32 %v2386, %v2395
  %v2411 = vadd.f32 %v2387, %v2394
  %v2412 = vadd.f32 %v2388, %v2397
  %v2413 = vadd.f32 %v2389, %v2396
  %v2414 = vadd.f32 %v2390, %v2399
  %v2415 = vadd.f32 %v2391, %v2398
  %v2416 = vadd.f32 %v2392, %v2401
  %v2417 = vadd.f32 %v2393, %v2400
  %v2418 = vrot.slane %v1788, 7
  %v2419 = vsel %vm2053, %v2238, %v2418
  %v2420 = vrot.slane %v1813, 7
  %v2421 = vsel %vm2053, %v2240, %v2420
  %v2422 = vrot.slane %v1838, 7
  %v2423 = vsel %vm2053, %v2242, %v2422
  %v2424 = vrot.slane %v1863, 7
  %v2425 = vsel %vm2053, %v2244, %v2424
  %v2434 = vadd.f32 %v2410, %v2419
  %v2435 = vadd.f32 %v2411, %v2418
  %v2436 = vadd.f32 %v2412, %v2421
  %v2437 = vadd.f32 %v2413, %v2420
  %v2438 = vadd.f32 %v2414, %v2423
  %v2439 = vadd.f32 %v2415, %v2422
  %v2440 = vadd.f32 %v2416, %v2425
  %v2441 = vadd.f32 %v2417, %v2424
  %v2442 = vadd.f32 %v2434, %v1788
  %v2443 = vadd.f32 %v2435, %v1793
  %v2444 = vadd.f32 %v2436, %v1813
  %v2445 = vadd.f32 %v2437, %v1818
  %v2446 = vadd.f32 %v2438, %v1838
  %v2447 = vadd.f32 %v2439, %v1843
  %v2448 = vadd.f32 %v2440, %v1863
  %v2449 = vadd.f32 %v2441, %v1868
  %v2454 = vrot.slane %v1793, 1
  %v2455 = vsel %vm1879, %v2274, %v2454
  %v2456 = vrot.slane %v1818, 1
  %v2457 = vsel %vm1879, %v2276, %v2456
  %v2458 = vrot.slane %v1843, 1
  %v2459 = vsel %vm1879, %v2278, %v2458
  %v2460 = vrot.slane %v1868, 1
  %v2461 = vsel %vm1879, %v2280, %v2460
  %v2470 = vadd.f32 %v2442, %v2455
  %v2471 = vadd.f32 %v2443, %v2454
  %v2472 = vadd.f32 %v2444, %v2457
  %v2473 = vadd.f32 %v2445, %v2456
  %v2474 = vadd.f32 %v2446, %v2459
  %v2475 = vadd.f32 %v2447, %v2458
  %v2476 = vadd.f32 %v2448, %v2461
  %v2477 = vadd.f32 %v2449, %v2460
  %v2478 = vrot.slane %v1793, 2
  %v2479 = vsel %vm1908, %v2298, %v2478
  %v2480 = vrot.slane %v1818, 2
  %v2481 = vsel %vm1908, %v2300, %v2480
  %v2482 = vrot.slane %v1843, 2
  %v2483 = vsel %vm1908, %v2302, %v2482
  %v2484 = vrot.slane %v1868, 2
  %v2485 = vsel %vm1908, %v2304, %v2484
  %v2494 = vadd.f32 %v2470, %v2479
  %v2495 = vadd.f32 %v2471, %v2478
  %v2496 = vadd.f32 %v2472, %v2481
  %v2497 = vadd.f32 %v2473, %v2480
  %v2498 = vadd.f32 %v2474, %v2483
  %v2499 = vadd.f32 %v2475, %v2482
  %v2500 = vadd.f32 %v2476, %v2485
  %v2501 = vadd.f32 %v2477, %v2484
  %v2502 = vrot.slane %v1793, 3
  %v2503 = vsel %vm1937, %v2322, %v2502
  %v2504 = vrot.slane %v1818, 3
  %v2505 = vsel %vm1937, %v2324, %v2504
  %v2506 = vrot.slane %v1843, 3
  %v2507 = vsel %vm1937, %v2326, %v2506
  %v2508 = vrot.slane %v1868, 3
  %v2509 = vsel %vm1937, %v2328, %v2508
  %v2518 = vadd.f32 %v2494, %v2503
  %v2519 = vadd.f32 %v2495, %v2502
  %v2520 = vadd.f32 %v2496, %v2505
  %v2521 = vadd.f32 %v2497, %v2504
  %v2522 = vadd.f32 %v2498, %v2507
  %v2523 = vadd.f32 %v2499, %v2506
  %v2524 = vadd.f32 %v2500, %v2509
  %v2525 = vadd.f32 %v2501, %v2508
  %v2526 = vrot.slane %v1793, 4
  %v2527 = vsel %vm1966, %v2346, %v2526
  %v2528 = vrot.slane %v1818, 4
  %v2529 = vsel %vm1966, %v2348, %v2528
  %v2530 = vrot.slane %v1843, 4
  %v2531 = vsel %vm1966, %v2350, %v2530
  %v2532 = vrot.slane %v1868, 4
  %v2533 = vsel %vm1966, %v2352, %v2532
  %v2542 = vadd.f32 %v2518, %v2527
  %v2543 = vadd.f32 %v2519, %v2526
  %v2544 = vadd.f32 %v2520, %v2529
  %v2545 = vadd.f32 %v2521, %v2528
  %v2546 = vadd.f32 %v2522, %v2531
  %v2547 = vadd.f32 %v2523, %v2530
  %v2548 = vadd.f32 %v2524, %v2533
  %v2549 = vadd.f32 %v2525, %v2532
  %v2550 = vrot.slane %v1793, 5
  %v2551 = vsel %vm1995, %v2370, %v2550
  %v2552 = vrot.slane %v1818, 5
  %v2553 = vsel %vm1995, %v2372, %v2552
  %v2554 = vrot.slane %v1843, 5
  %v2555 = vsel %vm1995, %v2374, %v2554
  %v2556 = vrot.slane %v1868, 5
  %v2557 = vsel %vm1995, %v2376, %v2556
  %v2566 = vadd.f32 %v2542, %v2551
  %v2567 = vadd.f32 %v2543, %v2550
  %v2568 = vadd.f32 %v2544, %v2553
  %v2569 = vadd.f32 %v2545, %v2552
  %v2570 = vadd.f32 %v2546, %v2555
  %v2571 = vadd.f32 %v2547, %v2554
  %v2572 = vadd.f32 %v2548, %v2557
  %v2573 = vadd.f32 %v2549, %v2556
  %v2574 = vmul.f32 %v2566, 0.033333335
  %v2575 = vmul.f32 %v2567, 0.033333335
  %v2576 = vmul.f32 %v2568, 0.033333335
  %v2577 = vmul.f32 %v2569, 0.033333335
  %v2578 = vmul.f32 %v2570, 0.033333335
  %v2579 = vmul.f32 %v2571, 0.033333335
  %v2580 = vmul.f32 %v2572, 0.033333335
  %v2581 = vmul.f32 %v2573, 0.033333335
  %v2582 = vsel %vm2053, %v2575, 0.0
  %v2583 = vadd.f32 %v2574, %v2582
  %v2584 = vrot.slane %v2583, 4
  %v2585 = vadd.f32 %v2583, %v2584
  %v2586 = vrot.slane %v2585, 2
  %v2587 = vadd.f32 %v2585, %v2586
  %v2588 = vrot.slane %v2587, 1
  %v2589 = vadd.f32 %v2587, %v2588
  %v2590 = vsel %vm2053, %v2577, 0.0
  %v2591 = vadd.f32 %v2576, %v2590
  %v2592 = vrot.slane %v2591, 4
  %v2593 = vadd.f32 %v2591, %v2592
  %v2594 = vrot.slane %v2593, 2
  %v2595 = vadd.f32 %v2593, %v2594
  %v2596 = vrot.slane %v2595, 1
  %v2597 = vadd.f32 %v2595, %v2596
  %v2598 = vmul.f32 %v2589, 0.11111111
  %v2599 = vmul.f32 %v2597, 0.11111111
  %v2600 = vsel %vm2053, %v2579, 0.0
  %v2601 = vadd.f32 %v2578, %v2600
  %v2602 = vrot.slane %v2601, 4
  %v2603 = vadd.f32 %v2601, %v2602
  %v2604 = vrot.slane %v2603, 2
  %v2605 = vadd.f32 %v2603, %v2604
  %v2606 = vrot.slane %v2605, 1
  %v2607 = vadd.f32 %v2605, %v2606
  %v2608 = vsel %vm2053, %v2581, 0.0
  %v2609 = vadd.f32 %v2580, %v2608
  %v2610 = vrot.slane %v2609, 4
  %v2611 = vadd.f32 %v2609, %v2610
  %v2612 = vrot.slane %v2611, 2
  %v2613 = vadd.f32 %v2611, %v2612
  %v2614 = vrot.slane %v2613, 1
  %v2615 = vadd.f32 %v2613, %v2614
  %v2616 = vmul.f32 %v2607, 0.11111111
  %v2617 = vmul.f32 %v2615, 0.11111111
  %v2618 = vsub.f32 %v2574, %v2598
  %v2619 = vsub.f32 %v2575, %v2598
  %v2620 = vsub.f32 %v2576, %v2599
  %v2621 = vsub.f32 %v2577, %v2599
  %v2622 = vsub.f32 %v2578, %v2616
  %v2623 = vsub.f32 %v2579, %v2616
  %v2624 = vsub.f32 %v2580, %v2617
  %v2625 = vsub.f32 %v2581, %v2617
  %v2626 = vmul.f32 %v2618, %v2618
  %v2627 = vmul.f32 %v2619, %v2619
  %v2628 = vmul.f32 %v2620, %v2620
  %v2629 = vmul.f32 %v2621, %v2621
  %v2630 = vsel %vm2053, %v2627, 0.0
  %v2631 = vadd.f32 %v2626, %v2630
  %v2632 = vrot.slane %v2631, 4
  %v2633 = vadd.f32 %v2631, %v2632
  %v2634 = vrot.slane %v2633, 2
  %v2635 = vadd.f32 %v2633, %v2634
  %v2636 = vrot.slane %v2635, 1
  %v2637 = vadd.f32 %v2635, %v2636
  %v2638 = vsel %vm2053, %v2629, 0.0
  %v2639 = vadd.f32 %v2628, %v2638
  %v2640 = vrot.slane %v2639, 4
  %v2641 = vadd.f32 %v2639, %v2640
  %v2642 = vrot.slane %v2641, 2
  %v2643 = vadd.f32 %v2641, %v2642
  %v2644 = vrot.slane %v2643, 1
  %v2645 = vadd.f32 %v2643, %v2644
  %v2646 = vmul.f32 %v2637, 0.125
  %v2647 = vmul.f32 %v2645, 0.125
  %v2648 = vmul.f32 %v2622, %v2622
  %v2649 = vmul.f32 %v2623, %v2623
  %v2650 = vmul.f32 %v2624, %v2624
  %v2651 = vmul.f32 %v2625, %v2625
  %v2652 = vsel %vm2053, %v2649, 0.0
  %v2653 = vadd.f32 %v2648, %v2652
  %v2654 = vrot.slane %v2653, 4
  %v2655 = vadd.f32 %v2653, %v2654
  %v2656 = vrot.slane %v2655, 2
  %v2657 = vadd.f32 %v2655, %v2656
  %v2658 = vrot.slane %v2657, 1
  %v2659 = vadd.f32 %v2657, %v2658
  %v2660 = vsel %vm2053, %v2651, 0.0
  %v2661 = vadd.f32 %v2650, %v2660
  %v2662 = vrot.slane %v2661, 4
  %v2663 = vadd.f32 %v2661, %v2662
  %v2664 = vrot.slane %v2663, 2
  %v2665 = vadd.f32 %v2663, %v2664
  %v2666 = vrot.slane %v2665, 1
  %v2667 = vadd.f32 %v2665, %v2666
  %v2668 = vmul.f32 %v2659, 0.125
  %v2669 = vmul.f32 %v2667, 0.125
  %v2670 = vmul.f32 %v2618, %v2622
  %v2671 = vmul.f32 %v2619, %v2623
  %v2672 = vmul.f32 %v2620, %v2624
  %v2673 = vmul.f32 %v2621, %v2625
  %v2674 = vsel %vm2053, %v2671, 0.0
  %v2675 = vadd.f32 %v2670, %v2674
  %v2676 = vrot.slane %v2675, 4
  %v2677 = vadd.f32 %v2675, %v2676
  %v2678 = vrot.slane %v2677, 2
  %v2679 = vadd.f32 %v2677, %v2678
  %v2680 = vrot.slane %v2679, 1
  %v2681 = vadd.f32 %v2679, %v2680
  %v2682 = vsel %vm2053, %v2673, 0.0
  %v2683 = vadd.f32 %v2672, %v2682
  %v2684 = vrot.slane %v2683, 4
  %v2685 = vadd.f32 %v2683, %v2684
  %v2686 = vrot.slane %v2685, 2
  %v2687 = vadd.f32 %v2685, %v2686
  %v2688 = vrot.slane %v2687, 1
  %v2689 = vadd.f32 %v2687, %v2688
  %v2690 = vadd.f32 %v2646, 1e-08
  %v2691 = vadd.f32 %v2647, 1e-08
  %v2692 = vrsqrt.pop %v2690
  %v2693 = vrsqrt.pop %v2691
  %v2694 = vmul.f32 %v2681, %v2692
  %v2695 = vmul.f32 %v2689, %v2693
  %v2696 = vadd.f32 %v2668, 1e-08
  %v2697 = vadd.f32 %v2669, 1e-08
  %v2698 = vrsqrt.pop %v2696
  %v2699 = vrsqrt.pop %v2697
  %v2700 = vmul.f32 %v2694, %v2698
  %v2701 = vmul.f32 %v2695, %v2699
  %v2702 = vmul.f32 %v2700, 0.11111111
  %v2703 = vmul.f32 %v2701, 0.11111111
  %2704 = vst [vmem:[%s3] sm:$0xff] 0.0
  %vm2707 = vcmask 1041409
  %v2708 = vsel %vm2707, %v2703, %v2702
  %2710 = vst [vmem:[%s3] sm:$0x3] %v2708
  // Predicated region
  $region14: #{stoi_loss.1} parent=0 // pred_check
    _
  $region15: #{stoi_loss.1} parent=0 // pred_check_branch
    %2712 = sbr.rel (0) target = $region17
  $region16: #{stoi_loss.1} parent=0 // pred_region
    _
  $region17: #{stoi_loss.1} parent=0 // pred_fallthru
    _
  // Predicated region
  $region18: #{stoi_loss.1} parent=0 // pred_check
    _
  $region19: #{stoi_loss.1} parent=0 // pred_check_branch
    %2714 = sbr.rel (0) target = $region21
  $region20: #{stoi_loss.1} parent=0 // pred_region
    _
  $region21: #{stoi_loss.1} parent=0 // pred_fallthru
    _

</llo_original>
